<compile_context>
chip_gen: v5e
topology: v5e:2x2
jax: 0.10.0
libtpu: 0.0.40
codegen_flags: <defaults>
</compile_context>

<pallas_src>
import jax
import jax.numpy as jnp
from jax import lax
from jax.experimental import pallas as pl
from jax.experimental.pallas import tpu as pltpu

# ---- small synthetic CLIP text-encoder config ----
VOCAB = 64        # vocab size
CONTEXT = 8       # sequence length
D_MODEL = 32      # transformer width
N_HEADS = 4       # attention heads
D_HEAD = D_MODEL // N_HEADS
N_LAYERS = 2      # transformer layers
EMBED_DIM = 16    # text_projection output dim
LANE_PAD = 128    # lane-dense padding for the projected output
EPS = 1e-5
NEG_INF = -1e30


def _layernorm(x, w, b):
    """fp32 LayerNorm over the last dim (w/b broadcast)."""
    mu = jnp.mean(x, axis=-1, keepdims=True)
    var = jnp.mean(jnp.square(x - mu), axis=-1, keepdims=True)
    return (x - mu) * lax.rsqrt(var + EPS) * w + b


def _encoder_kernel(eot_ref,                        # scalar prefetch: (B,) int32 EOT row per sequence
                    x_ref, pp_ref, wqkv_ref, wo_ref, w1_ref, w2_ref,
                    lnf_ref, proj_ref,
                    o_ref, acc_ref):
    """grid = (batch, layer). One step == one residual attention block for one
    sequence; the (L, D) residual stream stays resident in VMEM scratch across the
    layer axis.  The last layer step also does ln_final + EOT select + projection."""
    b = pl.program_id(0)
    l = pl.program_id(1)
    L, D = acc_ref.shape

    @pl.when(l == 0)
    def _():
        acc_ref[...] = x_ref[...]

    x = acc_ref[...]                                   # (L, D) fp32 residual stream
    pp = pp_ref[...]                                   # (8, 128) fp32 packed per-layer params
    ln1_w, ln1_b = pp[0:1, :D], pp[1:2, :D]
    bqkv = pp[2:3, :3 * D]
    bo = pp[3:4, :D]
    ln2_w, ln2_b = pp[4:5, :D], pp[5:6, :D]
    b1 = pp[6:7, :4 * D]
    b2 = pp[7:8, :D]

    # ---- causal multi-head self-attention ----
    h = _layernorm(x, ln1_w, ln1_b).astype(jnp.bfloat16)
    # fused lane-dense QKV projection: one (L, D) @ (D, 3D) MXU pass (1/sqrt(dh) pre-folded into q)
    qkv = jnp.dot(h, wqkv_ref[...], preferred_element_type=jnp.float32) + bqkv    # (L, 3D)

    # causal mask built in-kernel (no HBM mask array / DMA)
    rows = lax.broadcasted_iota(jnp.int32, (L, L), 0)
    cols = lax.broadcasted_iota(jnp.int32, (L, L), 1)
    mask = jnp.where(cols <= rows, 0.0, NEG_INF).astype(jnp.float32)

    # Per-head scores / softmax (H small & static -> unrolled; softmax is inherently per-head).
    # TODO(synk): at real CLIP sizes put heads on a batched/grid axis instead of this unrolled loop.
    ctx_parts = []
    for hd in range(N_HEADS):
        lo = hd * D_HEAD
        qh = qkv[:, lo:lo + D_HEAD].astype(jnp.bfloat16)               # (L, dh)
        kh = qkv[:, D + lo:D + lo + D_HEAD].astype(jnp.bfloat16)
        vh = qkv[:, 2 * D + lo:2 * D + lo + D_HEAD].astype(jnp.bfloat16)
        s = jnp.einsum('td,md->tm', qh, kh,
                       preferred_element_type=jnp.float32)             # (L, L) = q @ k^T
        s = s + mask
        s = s - jnp.max(s, axis=-1, keepdims=True)
        p = jnp.exp(s)
        p = p * pl.reciprocal(jnp.sum(p, axis=-1, keepdims=True), approx=True)
        ctx_parts.append(jnp.dot(p.astype(jnp.bfloat16), vh,
                                 preferred_element_type=jnp.float32))  # (L, dh)
    ctx = jnp.concatenate(ctx_parts, axis=-1)          # (L, D), head-major lanes

    # out-projection: single contraction over heads*dh (MXU accumulates across heads in one pass)
    x = x + jnp.dot(ctx.astype(jnp.bfloat16), wo_ref[...],
                    preferred_element_type=jnp.float32) + bo

    # ---- MLP with QuickGELU (element-wise math in fp32) ----
    h = _layernorm(x, ln2_w, ln2_b).astype(jnp.bfloat16)
    h1 = jnp.dot(h, w1_ref[...], preferred_element_type=jnp.float32) + b1         # (L, 4D)
    h1 = h1 * jax.nn.sigmoid(1.702 * h1)
    x = x + jnp.dot(h1.astype(jnp.bfloat16), w2_ref[...],
                    preferred_element_type=jnp.float32) + b2

    acc_ref[...] = x

    # ---- last layer: final LN + EOT-row select + lane-padded text projection ----
    @pl.when(l == pl.num_programs(1) - 1)
    def _():
        eot = eot_ref[b]
        row = acc_ref[pl.ds(eot, 1), :]                 # (1, D)
        lnf = lnf_ref[...]
        rowf = _layernorm(row, lnf[0:1, :], lnf[1:2, :])
        out = jnp.dot(rowf.astype(jnp.bfloat16), proj_ref[...],
                      preferred_element_type=jnp.float32)              # (1, LANE_PAD)
        o_ref[...] = jnp.broadcast_to(out, o_ref.shape)                # lane-dense (8, 128) store


def _run_encoder(x, eot, p):
    """x: (B, L, D) fp32, eot: (B,) int32 -> (B, 8, LANE_PAD) fp32 (row 0 holds the result)."""
    B, L, D = x.shape
    layer = lambda b, l, eot_ref: (l, 0, 0)            # stream per-layer weights
    const2 = lambda b, l, eot_ref: (0, 0)              # fetched once (block index never changes)
    in_specs = [
        pl.BlockSpec((None, L, D), lambda b, l, eot_ref: (b, 0, 0)),   # residual stream input (per seq)
        pl.BlockSpec((None, 8, LANE_PAD), layer),                       # packed small per-layer params
        pl.BlockSpec((None, D, 3 * D), layer),                          # fused wqkv
        pl.BlockSpec((None, D, D), layer),                              # out projection
        pl.BlockSpec((None, D, 4 * D), layer),                          # mlp w1
        pl.BlockSpec((None, 4 * D, D), layer),                          # mlp w2
        pl.BlockSpec((2, D), const2),                                   # ln_final w/b
        pl.BlockSpec((D, LANE_PAD), const2),                            # padded text projection
    ]
    out_specs = pl.BlockSpec((None, 8, LANE_PAD), lambda b, l, eot_ref: (b, 0, 0))
    return pl.pallas_call(
        _encoder_kernel,
        out_shape=jax.ShapeDtypeStruct((B, 8, LANE_PAD), jnp.float32),
        grid_spec=pltpu.PrefetchScalarGridSpec(
            num_scalar_prefetch=1,
            grid=(B, N_LAYERS),
            in_specs=in_specs,
            out_specs=out_specs,
            scratch_shapes=[pltpu.VMEM((L, D), jnp.float32)]),
        compiler_params=pltpu.CompilerParams(
            dimension_semantics=("parallel", "arbitrary")),
    )(eot, x, p['pp'], p['wqkv'], p['wo'], p['w1'], p['w2'], p['lnf'], p['text_proj_pad'])


@jax.jit
def encode_text(text, params):
    # glue: embedding gather + positional embedding; EOT = argmax of token ids
    x = params['tok_emb'][text] + params['pos_emb'][None, :, :]        # (B, L, D)
    eot = jnp.argmax(text, axis=-1).astype(jnp.int32)                  # (B,)
    y = _run_encoder(x, eot, params)                                   # (B, 8, LANE_PAD)
    return y[:, 0, :EMBED_DIM]                                         # (B, EMBED_DIM)


# ---- pure-JAX fp32 reference (same parameters) ----
def encode_text_ref(text, p):
    B, L = text.shape
    D, H, DH = D_MODEL, N_HEADS, D_HEAD
    x = p['tok_emb'][text] + p['pos_emb'][None, :, :]
    mask = jnp.where(jnp.arange(L)[None, :] <= jnp.arange(L)[:, None], 0.0, NEG_INF)
    for li in range(N_LAYERS):
        pp = p['pp'][li]
        wqkv = p['wqkv'][li].astype(jnp.float32)
        wo = p['wo'][li].astype(jnp.float32)
        w1 = p['w1'][li].astype(jnp.float32)
        w2 = p['w2'][li].astype(jnp.float32)
        h = _layernorm(x, pp[0, :D], pp[1, :D])
        qkv = h @ wqkv + pp[2, :3 * D]
        q, k, v = jnp.split(qkv, 3, axis=-1)
        heads = lambda t: t.reshape(B, L, H, DH).transpose(0, 2, 1, 3)
        qh, kh, vh = heads(q), heads(k), heads(v)
        s = jnp.einsum('bhtd,bhmd->bhtm', qh, kh) + mask
        pa = jax.nn.softmax(s, axis=-1)
        ctx = jnp.einsum('bhtm,bhmd->bhtd', pa, vh).transpose(0, 2, 1, 3).reshape(B, L, D)
        x = x + ctx @ wo + pp[3, :D]
        h = _layernorm(x, pp[4, :D], pp[5, :D])
        h1 = h @ w1 + pp[6, :4 * D]
        h1 = h1 * jax.nn.sigmoid(1.702 * h1)
        x = x + h1 @ w2 + pp[7, :D]
    eot = jnp.argmax(text, axis=-1)
    xe = x[jnp.arange(B), eot]
    xe = _layernorm(xe, p['lnf'][0], p['lnf'][1])
    return xe @ p['text_proj_pad'].astype(jnp.float32)[:, :EMBED_DIM]


def init_params(key):
    k_tok, k_pos, k_proj, k_bias, *k_layers = jax.random.split(key, 4 + N_LAYERS)
    scale = D_HEAD ** -0.5

    tok_emb = 0.02 * jax.random.normal(k_tok, (VOCAB, D_MODEL), jnp.float32)
    pos_emb = 0.01 * jax.random.normal(k_pos, (CONTEXT, D_MODEL), jnp.float32)
    text_proj = (D_MODEL ** -0.5) * jax.random.normal(k_proj, (D_MODEL, EMBED_DIM), jnp.float32)
    # lane-dense (128-wide) padded projection, bf16 for the MXU
    text_proj_pad = (jnp.zeros((D_MODEL, LANE_PAD), jnp.float32)
                     .at[:, :EMBED_DIM].set(text_proj).astype(jnp.bfloat16))

    wqkv_l, wo_l, w1_l, w2_l = [], [], [], []
    for i in range(N_LAYERS):
        k = jax.random.split(k_layers[i], 4)
        wqkv = 0.05 * jax.random.normal(k[0], (D_MODEL, 3 * D_MODEL), jnp.float32)
        wqkv = wqkv.at[:, :D_MODEL].multiply(scale)          # fold 1/sqrt(dh) into q weights
        wqkv_l.append(wqkv)
        wo_l.append(0.05 * jax.random.normal(k[1], (D_MODEL, D_MODEL), jnp.float32))
        w1_l.append(0.05 * jax.random.normal(k[2], (D_MODEL, 4 * D_MODEL), jnp.float32))
        w2_l.append(0.05 * jax.random.normal(k[3], (4 * D_MODEL, D_MODEL), jnp.float32))

    # packed small per-layer params: one (8, 128) fp32 tile per layer
    #   row 0/1: ln1 w/b | row 2: qkv bias (3D) | row 3: out-proj bias
    #   row 4/5: ln2 w/b | row 6: mlp b1 (4D)   | row 7: mlp b2
    kb = jax.random.split(k_bias, 4)
    pp = jnp.zeros((N_LAYERS, 8, LANE_PAD), jnp.float32)
    pp = pp.at[:, 0, :D_MODEL].set(1.0)
    pp = pp.at[:, 4, :D_MODEL].set(1.0)
    pp = pp.at[:, 2, :3 * D_MODEL].set(0.01 * jax.random.normal(kb[0], (N_LAYERS, 3 * D_MODEL)))
    pp = pp.at[:, 2, :D_MODEL].multiply(scale)               # fold 1/sqrt(dh) into q bias too
    pp = pp.at[:, 3, :D_MODEL].set(0.01 * jax.random.normal(kb[1], (N_LAYERS, D_MODEL)))
    pp = pp.at[:, 6, :4 * D_MODEL].set(0.01 * jax.random.normal(kb[2], (N_LAYERS, 4 * D_MODEL)))
    pp = pp.at[:, 7, :D_MODEL].set(0.01 * jax.random.normal(kb[3], (N_LAYERS, D_MODEL)))

    lnf = jnp.zeros((2, D_MODEL), jnp.float32).at[0].set(1.0)

    def bf16(lst):
        return jnp.stack(lst).astype(jnp.bfloat16)

    return dict(tok_emb=tok_emb, pos_emb=pos_emb, text_proj_pad=text_proj_pad,
                pp=pp, lnf=lnf,
                wqkv=bf16(wqkv_l), wo=bf16(wo_l), w1=bf16(w1_l), w2=bf16(w2_l))


if __name__ == "__main__":
    key = jax.random.PRNGKey(0)
    pkey, tkey = jax.random.split(key)
    params = init_params(pkey)

    B = 2
    text = jax.random.randint(tkey, (B, CONTEXT), 1, VOCAB - 1, dtype=jnp.int32)
    # place the EOT token (highest id in vocab) somewhere in each sequence
    text = text.at[:, CONTEXT - 3].set(VOCAB - 1)

    out = encode_text(text, params)
    jax.block_until_ready(out)
    assert out.shape == (B, EMBED_DIM) and out.dtype == jnp.float32
    assert bool(jnp.all(jnp.isfinite(out)))

    # loose check vs an fp32 reference (kernel uses bf16 matmuls + approx reciprocal)
    ref = encode_text_ref(text, params)
    err = float(jnp.max(jnp.abs(out - ref)))
    assert err < 0.1, f"max abs error vs fp32 reference too large: {err}"

    print("KERNEL_OK")
</pallas_src>

<mosaic_0001>
module attributes {stable_mosaic.version = 11 : i64} {
  func.func @_encoder_kernel(%arg0: i32, %arg1: i32, %arg2: memref<2xi32, #tpu.memory_space<smem>>, %arg3: memref<1x8x32xf32, #tpu.memory_space<vmem>>, %arg4: memref<1x8x128xf32, #tpu.memory_space<vmem>>, %arg5: memref<1x32x96xbf16, #tpu.memory_space<vmem>>, %arg6: memref<1x32x32xbf16, #tpu.memory_space<vmem>>, %arg7: memref<1x32x128xbf16, #tpu.memory_space<vmem>>, %arg8: memref<1x128x32xbf16, #tpu.memory_space<vmem>>, %arg9: memref<2x32xf32, #tpu.memory_space<vmem>>, %arg10: memref<32x128xbf16, #tpu.memory_space<vmem>>, %arg11: memref<1x8x128xf32, #tpu.memory_space<vmem>>, %arg12: memref<8x32xf32, #tpu.memory_space<vmem>>) attributes {dimension_semantics = [#tpu.dimension_semantics<parallel>, #tpu.dimension_semantics<arbitrary>], iteration_bounds = array<i64: 2, 2>, scalar_prefetch = 1 : i64, scratch_operands = 1 : i64, tpu.core_type = #tpu.core_type<tc>, window_params = [{transform_indices = @transform_0, window_bounds = array<i64: 1, 8, 32>}, {transform_indices = @transform_1, window_bounds = array<i64: 1, 8, 128>}, {transform_indices = @transform_2, window_bounds = array<i64: 1, 32, 96>}, {transform_indices = @transform_3, window_bounds = array<i64: 1, 32, 32>}, {transform_indices = @transform_4, window_bounds = array<i64: 1, 32, 128>}, {transform_indices = @transform_5, window_bounds = array<i64: 1, 128, 32>}, {pipeline_mode = #tpu.pipeline_mode<synchronous>, transform_indices = @transform_6, window_bounds = array<i64: 2, 32>}, {pipeline_mode = #tpu.pipeline_mode<synchronous>, transform_indices = @transform_7, window_bounds = array<i64: 32, 128>}, {transform_indices = @transform_8, window_bounds = array<i64: 1, 8, 128>}]} {
    %c0_i32 = arith.constant 0 : i32
    %0 = arith.cmpi eq, %arg1, %c0_i32 : i32
    %1 = arith.extui %0 : i1 to i32
    %c0_i32_0 = arith.constant 0 : i32
    %2 = arith.cmpi ne, %1, %c0_i32_0 : i32
    scf.if %2 {
      %c0_53 = arith.constant 0 : index
      %c0_54 = arith.constant 0 : index
      %c0_55 = arith.constant 0 : index
      %183 = vector.load %arg3[%c0_53, %c0_54, %c0_55] : memref<1x8x32xf32, #tpu.memory_space<vmem>>, vector<1x8x32xf32>
      %184 = vector.shape_cast %183 : vector<1x8x32xf32> to vector<8x32xf32>
      %c0_56 = arith.constant 0 : index
      %c0_57 = arith.constant 0 : index
      %185 = vector.load %arg12[%c0_56, %c0_57] : memref<8x32xf32, #tpu.memory_space<vmem>>, vector<8x32xf32>
      tpu.vector_store %arg12[%c0_56, %c0_57], %184 {strides = array<i32>} : memref<8x32xf32, #tpu.memory_space<vmem>>, vector<8x32xf32>,
    } else {
    }
    %c0 = arith.constant 0 : index
    %c0_1 = arith.constant 0 : index
    %3 = vector.load %arg12[%c0, %c0_1] : memref<8x32xf32, #tpu.memory_space<vmem>>, vector<8x32xf32>
    %c0_2 = arith.constant 0 : index
    %c0_3 = arith.constant 0 : index
    %c0_4 = arith.constant 0 : index
    %4 = vector.load %arg4[%c0_2, %c0_3, %c0_4] : memref<1x8x128xf32, #tpu.memory_space<vmem>>, vector<1x8x128xf32>
    %5 = vector.shape_cast %4 : vector<1x8x128xf32> to vector<8x128xf32>
    %6 = vector.extract_strided_slice %5 {offsets = [0, 0], sizes = [1, 32], strides = [1, 1]} : vector<8x128xf32> to vector<1x32xf32>
    %7 = vector.extract_strided_slice %5 {offsets = [1, 0], sizes = [1, 32], strides = [1, 1]} : vector<8x128xf32> to vector<1x32xf32>
    %8 = vector.extract_strided_slice %5 {offsets = [2, 0], sizes = [1, 96], strides = [1, 1]} : vector<8x128xf32> to vector<1x96xf32>
    %9 = vector.extract_strided_slice %5 {offsets = [3, 0], sizes = [1, 32], strides = [1, 1]} : vector<8x128xf32> to vector<1x32xf32>
    %10 = vector.extract_strided_slice %5 {offsets = [4, 0], sizes = [1, 32], strides = [1, 1]} : vector<8x128xf32> to vector<1x32xf32>
    %11 = vector.extract_strided_slice %5 {offsets = [5, 0], sizes = [1, 32], strides = [1, 1]} : vector<8x128xf32> to vector<1x32xf32>
    %12 = vector.extract_strided_slice %5 {offsets = [6, 0], sizes = [1, 128], strides = [1, 1]} : vector<8x128xf32> to vector<1x128xf32>
    %13 = vector.extract_strided_slice %5 {offsets = [7, 0], sizes = [1, 32], strides = [1, 1]} : vector<8x128xf32> to vector<1x32xf32>
    %cst = arith.constant dense<0.000000e+00> : vector<8xf32>
    %14 = vector.multi_reduction <add>, %3, %cst [1] : vector<8x32xf32> to vector<8xf32>
    %15 = vector.shape_cast %14 : vector<8xf32> to vector<8x1xf32>
    %cst_5 = arith.constant 3.200000e+01 : f32
    %16 = vector.broadcast %cst_5 : f32 to vector<8x1xf32>
    %17 = arith.divf %15, %16 : vector<8x1xf32>
    %18 = vector.broadcast %17 : vector<8x1xf32> to vector<8x32xf32>
    %19 = arith.subf %3, %18 : vector<8x32xf32>
    %20 = arith.mulf %19, %19 : vector<8x32xf32>
    %cst_6 = arith.constant dense<0.000000e+00> : vector<8xf32>
    %21 = vector.multi_reduction <add>, %20, %cst_6 [1] : vector<8x32xf32> to vector<8xf32>
    %22 = vector.shape_cast %21 : vector<8xf32> to vector<8x1xf32>
    %cst_7 = arith.constant 3.200000e+01 : f32
    %23 = vector.broadcast %cst_7 : f32 to vector<8x1xf32>
    %24 = arith.divf %22, %23 : vector<8x1xf32>
    %25 = vector.broadcast %17 : vector<8x1xf32> to vector<8x32xf32>
    %26 = arith.subf %3, %25 : vector<8x32xf32>
    %cst_8 = arith.constant 9.99999974E-6 : f32
    %27 = vector.broadcast %cst_8 : f32 to vector<8x1xf32>
    %28 = arith.addf %24, %27 : vector<8x1xf32>
    %29 = math.rsqrt %28 : vector<8x1xf32>
    %30 = vector.broadcast %29 : vector<8x1xf32> to vector<8x32xf32>
    %31 = arith.mulf %26, %30 : vector<8x32xf32>
    %32 = vector.broadcast %6 : vector<1x32xf32> to vector<8x32xf32>
    %33 = arith.mulf %31, %32 : vector<8x32xf32>
    %34 = vector.broadcast %7 : vector<1x32xf32> to vector<8x32xf32>
    %35 = arith.addf %33, %34 : vector<8x32xf32>
    %36 = arith.truncf %35 : vector<8x32xf32> to vector<8x32xbf16>
    %c0_9 = arith.constant 0 : index
    %c0_10 = arith.constant 0 : index
    %c0_11 = arith.constant 0 : index
    %37 = vector.load %arg5[%c0_9, %c0_10, %c0_11] : memref<1x32x96xbf16, #tpu.memory_space<vmem>>, vector<1x32x96xbf16>
    %38 = vector.shape_cast %37 : vector<1x32x96xbf16> to vector<32x96xbf16>
    %cst_12 = arith.constant dense<0.000000e+00> : vector<8x96xf32>
    %39 = tpu.matmul %36, %38, %cst_12 {dimension_numbers = #tpu.dot_dimension_numbers<[1], [0], [0], [1], [0, 0, 1, 1], [], []>} : vector<8x32xbf16>, vector<32x96xbf16>, vector<8x96xf32> -> vector<8x96xf32>
    %40 = vector.broadcast %8 : vector<1x96xf32> to vector<8x96xf32>
    %41 = arith.addf %39, %40 : vector<8x96xf32>
    %42 = tpu.iota {dimensions = array<i32: 0>} : vector<8x8xi32>
    %43 = tpu.iota {dimensions = array<i32: 1>} : vector<8x8xi32>
    %44 = arith.cmpi sle, %43, %42 : vector<8x8xi32>
    %cst_13 = arith.constant 0.000000e+00 : f32
    %cst_14 = arith.constant -1.000000e+30 : f32
    %45 = vector.broadcast %cst_13 : f32 to vector<8x8xf32>
    %46 = vector.broadcast %cst_14 : f32 to vector<8x8xf32>
    %47 = arith.select %44, %45, %46 : vector<8x8xi1>, vector<8x8xf32>
    %48 = vector.extract_strided_slice %41 {offsets = [0, 0], sizes = [8, 8], strides = [1, 1]} : vector<8x96xf32> to vector<8x8xf32>
    %49 = arith.truncf %48 : vector<8x8xf32> to vector<8x8xbf16>
    %50 = vector.extract_strided_slice %41 {offsets = [0, 32], sizes = [8, 8], strides = [1, 1]} : vector<8x96xf32> to vector<8x8xf32>
    %51 = arith.truncf %50 : vector<8x8xf32> to vector<8x8xbf16>
    %52 = vector.extract_strided_slice %41 {offsets = [0, 64], sizes = [8, 8], strides = [1, 1]} : vector<8x96xf32> to vector<8x8xf32>
    %53 = arith.truncf %52 : vector<8x8xf32> to vector<8x8xbf16>
    "tpu.trace_start"() <{level = 10 : i32, message = "td,md->tm"}> : () -> ()
    %cst_15 = arith.constant dense<0.000000e+00> : vector<8x8xf32>
    %54 = tpu.matmul %49, %51, %cst_15 {dimension_numbers = #tpu.dot_dimension_numbers<[1], [1], [0], [0], [0, 0, 1, 0], [], []>} : vector<8x8xbf16>, vector<8x8xbf16>, vector<8x8xf32> -> vector<8x8xf32>
    "tpu.trace_stop"() : () -> ()
    %55 = arith.addf %54, %47 : vector<8x8xf32>
    %cst_16 = arith.constant dense<0xFF800000> : vector<8xf32>
    %56 = vector.multi_reduction <maximumf>, %55, %cst_16 [1] : vector<8x8xf32> to vector<8xf32>
    %57 = vector.shape_cast %56 : vector<8xf32> to vector<8x1xf32>
    %58 = vector.broadcast %57 : vector<8x1xf32> to vector<8x8xf32>
    %59 = arith.subf %55, %58 : vector<8x8xf32>
    %60 = math.exp %59 : vector<8x8xf32>
    %cst_17 = arith.constant dense<0.000000e+00> : vector<8xf32>
    %61 = vector.multi_reduction <add>, %60, %cst_17 [1] : vector<8x8xf32> to vector<8xf32>
    %62 = vector.shape_cast %61 : vector<8xf32> to vector<8x1xf32>
    %63 = tpu.reciprocal %62 {approx = true} : vector<8x1xf32> -> vector<8x1xf32>
    %64 = vector.broadcast %63 : vector<8x1xf32> to vector<8x8xf32>
    %65 = arith.mulf %60, %64 : vector<8x8xf32>
    %66 = arith.truncf %65 : vector<8x8xf32> to vector<8x8xbf16>
    %cst_18 = arith.constant dense<0.000000e+00> : vector<8x8xf32>
    %67 = tpu.matmul %66, %53, %cst_18 {dimension_numbers = #tpu.dot_dimension_numbers<[1], [0], [0], [1], [0, 0, 1, 1], [], []>} : vector<8x8xbf16>, vector<8x8xbf16>, vector<8x8xf32> -> vector<8x8xf32>
    %68 = vector.extract_strided_slice %41 {offsets = [0, 8], sizes = [8, 8], strides = [1, 1]} : vector<8x96xf32> to vector<8x8xf32>
    %69 = arith.truncf %68 : vector<8x8xf32> to vector<8x8xbf16>
    %70 = vector.extract_strided_slice %41 {offsets = [0, 40], sizes = [8, 8], strides = [1, 1]} : vector<8x96xf32> to vector<8x8xf32>
    %71 = arith.truncf %70 : vector<8x8xf32> to vector<8x8xbf16>
    %72 = vector.extract_strided_slice %41 {offsets = [0, 72], sizes = [8, 8], strides = [1, 1]} : vector<8x96xf32> to vector<8x8xf32>
    %73 = arith.truncf %72 : vector<8x8xf32> to vector<8x8xbf16>
    "tpu.trace_start"() <{level = 10 : i32, message = "td,md->tm"}> : () -> ()
    %cst_19 = arith.constant dense<0.000000e+00> : vector<8x8xf32>
    %74 = tpu.matmul %69, %71, %cst_19 {dimension_numbers = #tpu.dot_dimension_numbers<[1], [1], [0], [0], [0, 0, 1, 0], [], []>} : vector<8x8xbf16>, vector<8x8xbf16>, vector<8x8xf32> -> vector<8x8xf32>
    "tpu.trace_stop"() : () -> ()
    %75 = arith.addf %74, %47 : vector<8x8xf32>
    %cst_20 = arith.constant dense<0xFF800000> : vector<8xf32>
    %76 = vector.multi_reduction <maximumf>, %75, %cst_20 [1] : vector<8x8xf32> to vector<8xf32>
    %77 = vector.shape_cast %76 : vector<8xf32> to vector<8x1xf32>
    %78 = vector.broadcast %77 : vector<8x1xf32> to vector<8x8xf32>
    %79 = arith.subf %75, %78 : vector<8x8xf32>
    %80 = math.exp %79 : vector<8x8xf32>
    %cst_21 = arith.constant dense<0.000000e+00> : vector<8xf32>
    %81 = vector.multi_reduction <add>, %80, %cst_21 [1] : vector<8x8xf32> to vector<8xf32>
    %82 = vector.shape_cast %81 : vector<8xf32> to vector<8x1xf32>
    %83 = tpu.reciprocal %82 {approx = true} : vector<8x1xf32> -> vector<8x1xf32>
    %84 = vector.broadcast %83 : vector<8x1xf32> to vector<8x8xf32>
    %85 = arith.mulf %80, %84 : vector<8x8xf32>
    %86 = arith.truncf %85 : vector<8x8xf32> to vector<8x8xbf16>
    %cst_22 = arith.constant dense<0.000000e+00> : vector<8x8xf32>
    %87 = tpu.matmul %86, %73, %cst_22 {dimension_numbers = #tpu.dot_dimension_numbers<[1], [0], [0], [1], [0, 0, 1, 1], [], []>} : vector<8x8xbf16>, vector<8x8xbf16>, vector<8x8xf32> -> vector<8x8xf32>
    %88 = vector.extract_strided_slice %41 {offsets = [0, 16], sizes = [8, 8], strides = [1, 1]} : vector<8x96xf32> to vector<8x8xf32>
    %89 = arith.truncf %88 : vector<8x8xf32> to vector<8x8xbf16>
    %90 = vector.extract_strided_slice %41 {offsets = [0, 48], sizes = [8, 8], strides = [1, 1]} : vector<8x96xf32> to vector<8x8xf32>
    %91 = arith.truncf %90 : vector<8x8xf32> to vector<8x8xbf16>
    %92 = vector.extract_strided_slice %41 {offsets = [0, 80], sizes = [8, 8], strides = [1, 1]} : vector<8x96xf32> to vector<8x8xf32>
    %93 = arith.truncf %92 : vector<8x8xf32> to vector<8x8xbf16>
    "tpu.trace_start"() <{level = 10 : i32, message = "td,md->tm"}> : () -> ()
    %cst_23 = arith.constant dense<0.000000e+00> : vector<8x8xf32>
    %94 = tpu.matmul %89, %91, %cst_23 {dimension_numbers = #tpu.dot_dimension_numbers<[1], [1], [0], [0], [0, 0, 1, 0], [], []>} : vector<8x8xbf16>, vector<8x8xbf16>, vector<8x8xf32> -> vector<8x8xf32>
    "tpu.trace_stop"() : () -> ()
    %95 = arith.addf %94, %47 : vector<8x8xf32>
    %cst_24 = arith.constant dense<0xFF800000> : vector<8xf32>
    %96 = vector.multi_reduction <maximumf>, %95, %cst_24 [1] : vector<8x8xf32> to vector<8xf32>
    %97 = vector.shape_cast %96 : vector<8xf32> to vector<8x1xf32>
    %98 = vector.broadcast %97 : vector<8x1xf32> to vector<8x8xf32>
    %99 = arith.subf %95, %98 : vector<8x8xf32>
    %100 = math.exp %99 : vector<8x8xf32>
    %cst_25 = arith.constant dense<0.000000e+00> : vector<8xf32>
    %101 = vector.multi_reduction <add>, %100, %cst_25 [1] : vector<8x8xf32> to vector<8xf32>
    %102 = vector.shape_cast %101 : vector<8xf32> to vector<8x1xf32>
    %103 = tpu.reciprocal %102 {approx = true} : vector<8x1xf32> -> vector<8x1xf32>
    %104 = vector.broadcast %103 : vector<8x1xf32> to vector<8x8xf32>
    %105 = arith.mulf %100, %104 : vector<8x8xf32>
    %106 = arith.truncf %105 : vector<8x8xf32> to vector<8x8xbf16>
    %cst_26 = arith.constant dense<0.000000e+00> : vector<8x8xf32>
    %107 = tpu.matmul %106, %93, %cst_26 {dimension_numbers = #tpu.dot_dimension_numbers<[1], [0], [0], [1], [0, 0, 1, 1], [], []>} : vector<8x8xbf16>, vector<8x8xbf16>, vector<8x8xf32> -> vector<8x8xf32>
    %108 = vector.extract_strided_slice %41 {offsets = [0, 24], sizes = [8, 8], strides = [1, 1]} : vector<8x96xf32> to vector<8x8xf32>
    %109 = arith.truncf %108 : vector<8x8xf32> to vector<8x8xbf16>
    %110 = vector.extract_strided_slice %41 {offsets = [0, 56], sizes = [8, 8], strides = [1, 1]} : vector<8x96xf32> to vector<8x8xf32>
    %111 = arith.truncf %110 : vector<8x8xf32> to vector<8x8xbf16>
    %112 = vector.extract_strided_slice %41 {offsets = [0, 88], sizes = [8, 8], strides = [1, 1]} : vector<8x96xf32> to vector<8x8xf32>
    %113 = arith.truncf %112 : vector<8x8xf32> to vector<8x8xbf16>
    "tpu.trace_start"() <{level = 10 : i32, message = "td,md->tm"}> : () -> ()
    %cst_27 = arith.constant dense<0.000000e+00> : vector<8x8xf32>
    %114 = tpu.matmul %109, %111, %cst_27 {dimension_numbers = #tpu.dot_dimension_numbers<[1], [1], [0], [0], [0, 0, 1, 0], [], []>} : vector<8x8xbf16>, vector<8x8xbf16>, vector<8x8xf32> -> vector<8x8xf32>
    "tpu.trace_stop"() : () -> ()
    %115 = arith.addf %114, %47 : vector<8x8xf32>
    %cst_28 = arith.constant dense<0xFF800000> : vector<8xf32>
    %116 = vector.multi_reduction <maximumf>, %115, %cst_28 [1] : vector<8x8xf32> to vector<8xf32>
    %117 = vector.shape_cast %116 : vector<8xf32> to vector<8x1xf32>
    %118 = vector.broadcast %117 : vector<8x1xf32> to vector<8x8xf32>
    %119 = arith.subf %115, %118 : vector<8x8xf32>
    %120 = math.exp %119 : vector<8x8xf32>
    %cst_29 = arith.constant dense<0.000000e+00> : vector<8xf32>
    %121 = vector.multi_reduction <add>, %120, %cst_29 [1] : vector<8x8xf32> to vector<8xf32>
    %122 = vector.shape_cast %121 : vector<8xf32> to vector<8x1xf32>
    %123 = tpu.reciprocal %122 {approx = true} : vector<8x1xf32> -> vector<8x1xf32>
    %124 = vector.broadcast %123 : vector<8x1xf32> to vector<8x8xf32>
    %125 = arith.mulf %120, %124 : vector<8x8xf32>
    %126 = arith.truncf %125 : vector<8x8xf32> to vector<8x8xbf16>
    %cst_30 = arith.constant dense<0.000000e+00> : vector<8x8xf32>
    %127 = tpu.matmul %126, %113, %cst_30 {dimension_numbers = #tpu.dot_dimension_numbers<[1], [0], [0], [1], [0, 0, 1, 1], [], []>} : vector<8x8xbf16>, vector<8x8xbf16>, vector<8x8xf32> -> vector<8x8xf32>
    %128 = tpu.concatenate %67, %87, %107, %127 in 1 : vector<8x8xf32>, vector<8x8xf32>, vector<8x8xf32>, vector<8x8xf32> -> vector<8x32xf32>
    %129 = arith.truncf %128 : vector<8x32xf32> to vector<8x32xbf16>
    %c0_31 = arith.constant 0 : index
    %c0_32 = arith.constant 0 : index
    %c0_33 = arith.constant 0 : index
    %130 = vector.load %arg6[%c0_31, %c0_32, %c0_33] : memref<1x32x32xbf16, #tpu.memory_space<vmem>>, vector<1x32x32xbf16>
    %131 = vector.shape_cast %130 : vector<1x32x32xbf16> to vector<32x32xbf16>
    %cst_34 = arith.constant dense<0.000000e+00> : vector<8x32xf32>
    %132 = tpu.matmul %129, %131, %cst_34 {dimension_numbers = #tpu.dot_dimension_numbers<[1], [0], [0], [1], [0, 0, 1, 1], [], []>} : vector<8x32xbf16>, vector<32x32xbf16>, vector<8x32xf32> -> vector<8x32xf32>
    %133 = arith.addf %3, %132 : vector<8x32xf32>
    %134 = vector.broadcast %9 : vector<1x32xf32> to vector<8x32xf32>
    %135 = arith.addf %133, %134 : vector<8x32xf32>
    %cst_35 = arith.constant dense<0.000000e+00> : vector<8xf32>
    %136 = vector.multi_reduction <add>, %135, %cst_35 [1] : vector<8x32xf32> to vector<8xf32>
    %137 = vector.shape_cast %136 : vector<8xf32> to vector<8x1xf32>
    %cst_36 = arith.constant 3.200000e+01 : f32
    %138 = vector.broadcast %cst_36 : f32 to vector<8x1xf32>
    %139 = arith.divf %137, %138 : vector<8x1xf32>
    %140 = vector.broadcast %139 : vector<8x1xf32> to vector<8x32xf32>
    %141 = arith.subf %135, %140 : vector<8x32xf32>
    %142 = arith.mulf %141, %141 : vector<8x32xf32>
    %cst_37 = arith.constant dense<0.000000e+00> : vector<8xf32>
    %143 = vector.multi_reduction <add>, %142, %cst_37 [1] : vector<8x32xf32> to vector<8xf32>
    %144 = vector.shape_cast %143 : vector<8xf32> to vector<8x1xf32>
    %cst_38 = arith.constant 3.200000e+01 : f32
    %145 = vector.broadcast %cst_38 : f32 to vector<8x1xf32>
    %146 = arith.divf %144, %145 : vector<8x1xf32>
    %147 = vector.broadcast %139 : vector<8x1xf32> to vector<8x32xf32>
    %148 = arith.subf %135, %147 : vector<8x32xf32>
    %cst_39 = arith.constant 9.99999974E-6 : f32
    %149 = vector.broadcast %cst_39 : f32 to vector<8x1xf32>
    %150 = arith.addf %146, %149 : vector<8x1xf32>
    %151 = math.rsqrt %150 : vector<8x1xf32>
    %152 = vector.broadcast %151 : vector<8x1xf32> to vector<8x32xf32>
    %153 = arith.mulf %148, %152 : vector<8x32xf32>
    %154 = vector.broadcast %10 : vector<1x32xf32> to vector<8x32xf32>
    %155 = arith.mulf %153, %154 : vector<8x32xf32>
    %156 = vector.broadcast %11 : vector<1x32xf32> to vector<8x32xf32>
    %157 = arith.addf %155, %156 : vector<8x32xf32>
    %158 = arith.truncf %157 : vector<8x32xf32> to vector<8x32xbf16>
    %c0_40 = arith.constant 0 : index
    %c0_41 = arith.constant 0 : index
    %c0_42 = arith.constant 0 : index
    %159 = vector.load %arg7[%c0_40, %c0_41, %c0_42] : memref<1x32x128xbf16, #tpu.memory_space<vmem>>, vector<1x32x128xbf16>
    %160 = vector.shape_cast %159 : vector<1x32x128xbf16> to vector<32x128xbf16>
    %cst_43 = arith.constant dense<0.000000e+00> : vector<8x128xf32>
    %161 = tpu.matmul %158, %160, %cst_43 {dimension_numbers = #tpu.dot_dimension_numbers<[1], [0], [0], [1], [0, 0, 1, 1], [], []>} : vector<8x32xbf16>, vector<32x128xbf16>, vector<8x128xf32> -> vector<8x128xf32>
    %162 = vector.broadcast %12 : vector<1x128xf32> to vector<8x128xf32>
    %163 = arith.addf %161, %162 : vector<8x128xf32>
    %cst_44 = arith.constant 1.702000e+00 : f32
    %164 = vector.broadcast %cst_44 : f32 to vector<8x128xf32>
    %165 = arith.mulf %164, %163 : vector<8x128xf32>
    %166 = arith.negf %165 : vector<8x128xf32>
    %167 = math.exp %166 : vector<8x128xf32>
    %cst_45 = arith.constant 1.000000e+00 : f32
    %168 = vector.broadcast %cst_45 : f32 to vector<8x128xf32>
    %169 = arith.addf %168, %167 : vector<8x128xf32>
    %170 = arith.divf %168, %169 : vector<8x128xf32>
    %171 = arith.mulf %163, %170 : vector<8x128xf32>
    %172 = arith.truncf %171 : vector<8x128xf32> to vector<8x128xbf16>
    %c0_46 = arith.constant 0 : index
    %c0_47 = arith.constant 0 : index
    %c0_48 = arith.constant 0 : index
    %173 = vector.load %arg8[%c0_46, %c0_47, %c0_48] : memref<1x128x32xbf16, #tpu.memory_space<vmem>>, vector<1x128x32xbf16>
    %174 = vector.shape_cast %173 : vector<1x128x32xbf16> to vector<128x32xbf16>
    %cst_49 = arith.constant dense<0.000000e+00> : vector<8x32xf32>
    %175 = tpu.matmul %172, %174, %cst_49 {dimension_numbers = #tpu.dot_dimension_numbers<[1], [0], [0], [1], [0, 0, 1, 1], [], []>} : vector<8x128xbf16>, vector<128x32xbf16>, vector<8x32xf32> -> vector<8x32xf32>
    %176 = arith.addf %135, %175 : vector<8x32xf32>
    %177 = vector.broadcast %13 : vector<1x32xf32> to vector<8x32xf32>
    %178 = arith.addf %176, %177 : vector<8x32xf32>
    %c0_50 = arith.constant 0 : index
    %c0_51 = arith.constant 0 : index
    %179 = vector.load %arg12[%c0_50, %c0_51] : memref<8x32xf32, #tpu.memory_space<vmem>>, vector<8x32xf32>
    tpu.vector_store %arg12[%c0_50, %c0_51], %178 {strides = array<i32>} : memref<8x32xf32, #tpu.memory_space<vmem>>, vector<8x32xf32>,
    %c1_i32 = arith.constant 1 : i32
    %180 = arith.cmpi eq, %arg1, %c1_i32 : i32
    %181 = arith.extui %180 : i1 to i32
    %c0_i32_52 = arith.constant 0 : i32
    %182 = arith.cmpi ne, %181, %c0_i32_52 : i32
    scf.if %182 {
      %183 = arith.index_cast %arg0 : i32 to index
      %184 = memref.load %arg2[%183] : memref<2xi32, #tpu.memory_space<smem>>
      %185 = arith.index_cast %184 : i32 to index
      %c0_53 = arith.constant 0 : index
      %186 = vector.load %arg12[%185, %c0_53] : memref<8x32xf32, #tpu.memory_space<vmem>>, vector<1x32xf32>
      %c0_54 = arith.constant 0 : index
      %c0_55 = arith.constant 0 : index
      %187 = vector.load %arg9[%c0_54, %c0_55] : memref<2x32xf32, #tpu.memory_space<vmem>>, vector<2x32xf32>
      %188 = vector.extract_strided_slice %187 {offsets = [0, 0], sizes = [1, 32], strides = [1, 1]} : vector<2x32xf32> to vector<1x32xf32>
      %189 = vector.extract_strided_slice %187 {offsets = [1, 0], sizes = [1, 32], strides = [1, 1]} : vector<2x32xf32> to vector<1x32xf32>
      %cst_56 = arith.constant dense<0.000000e+00> : vector<1xf32>
      %190 = vector.multi_reduction <add>, %186, %cst_56 [1] : vector<1x32xf32> to vector<1xf32>
      %191 = vector.shape_cast %190 : vector<1xf32> to vector<1x1xf32>
      %cst_57 = arith.constant 3.200000e+01 : f32
      %192 = vector.broadcast %cst_57 : f32 to vector<1x1xf32>
      %193 = arith.divf %191, %192 : vector<1x1xf32>
      %194 = vector.broadcast %193 : vector<1x1xf32> to vector<1x32xf32>
      %195 = arith.subf %186, %194 : vector<1x32xf32>
      %196 = arith.mulf %195, %195 : vector<1x32xf32>
      %cst_58 = arith.constant dense<0.000000e+00> : vector<1xf32>
      %197 = vector.multi_reduction <add>, %196, %cst_58 [1] : vector<1x32xf32> to vector<1xf32>
      %198 = vector.shape_cast %197 : vector<1xf32> to vector<1x1xf32>
      %cst_59 = arith.constant 3.200000e+01 : f32
      %199 = vector.broadcast %cst_59 : f32 to vector<1x1xf32>
      %200 = arith.divf %198, %199 : vector<1x1xf32>
      %201 = vector.broadcast %193 : vector<1x1xf32> to vector<1x32xf32>
      %202 = arith.subf %186, %201 : vector<1x32xf32>
      %cst_60 = arith.constant 9.99999974E-6 : f32
      %203 = vector.broadcast %cst_60 : f32 to vector<1x1xf32>
      %204 = arith.addf %200, %203 : vector<1x1xf32>
      %205 = math.rsqrt %204 : vector<1x1xf32>
      %206 = vector.broadcast %205 : vector<1x1xf32> to vector<1x32xf32>
      %207 = arith.mulf %202, %206 : vector<1x32xf32>
      %208 = arith.mulf %207, %188 : vector<1x32xf32>
      %209 = arith.addf %208, %189 : vector<1x32xf32>
      %210 = arith.truncf %209 : vector<1x32xf32> to vector<1x32xbf16>
      %c0_61 = arith.constant 0 : index
      %c0_62 = arith.constant 0 : index
      %211 = vector.load %arg10[%c0_61, %c0_62] : memref<32x128xbf16, #tpu.memory_space<vmem>>, vector<32x128xbf16>
      %cst_63 = arith.constant dense<0.000000e+00> : vector<1x128xf32>
      %212 = tpu.matmul %210, %211, %cst_63 {dimension_numbers = #tpu.dot_dimension_numbers<[1], [0], [0], [1], [0, 0, 1, 1], [], []>} : vector<1x32xbf16>, vector<32x128xbf16>, vector<1x128xf32> -> vector<1x128xf32>
      %213 = vector.shape_cast %212 : vector<1x128xf32> to vector<1x128xf32>
      %214 = vector.broadcast %213 : vector<1x128xf32> to vector<8x128xf32>
      %c0_64 = arith.constant 0 : index
      %c0_65 = arith.constant 0 : index
      %c0_66 = arith.constant 0 : index
      %215 = vector.load %arg11[%c0_64, %c0_65, %c0_66] : memref<1x8x128xf32, #tpu.memory_space<vmem>>, vector<1x8x128xf32>
      %216 = vector.shape_cast %215 : vector<1x8x128xf32> to vector<8x128xf32>
      %217 = vector.shape_cast %214 : vector<8x128xf32> to vector<1x8x128xf32>
      tpu.vector_store %arg11[%c0_64, %c0_65, %c0_66], %217 {strides = array<i32>} : memref<1x8x128xf32, #tpu.memory_space<vmem>>, vector<1x8x128xf32>,
    } else {
    }
    return
  }
  func.func @transform_0(%arg0: i32, %arg1: i32, %arg2: memref<2xi32, #tpu.memory_space<smem>>) -> (i32, i32, i32) {
    %c0_i32 = arith.constant 0 : i32
    %c0_i32_0 = arith.constant 0 : i32
    %c0_i32_1 = arith.constant 0 : i32
    return %arg0, %c0_i32, %c0_i32_0 : i32, i32, i32
  }
  func.func @transform_1(%arg0: i32, %arg1: i32, %arg2: memref<2xi32, #tpu.memory_space<smem>>) -> (i32, i32, i32) {
    %c0_i32 = arith.constant 0 : i32
    %c0_i32_0 = arith.constant 0 : i32
    %c0_i32_1 = arith.constant 0 : i32
    return %arg1, %c0_i32, %c0_i32_0 : i32, i32, i32
  }
  func.func @transform_2(%arg0: i32, %arg1: i32, %arg2: memref<2xi32, #tpu.memory_space<smem>>) -> (i32, i32, i32) {
    %c0_i32 = arith.constant 0 : i32
    %c0_i32_0 = arith.constant 0 : i32
    %c0_i32_1 = arith.constant 0 : i32
    return %arg1, %c0_i32, %c0_i32_0 : i32, i32, i32
  }
  func.func @transform_3(%arg0: i32, %arg1: i32, %arg2: memref<2xi32, #tpu.memory_space<smem>>) -> (i32, i32, i32) {
    %c0_i32 = arith.constant 0 : i32
    %c0_i32_0 = arith.constant 0 : i32
    %c0_i32_1 = arith.constant 0 : i32
    return %arg1, %c0_i32, %c0_i32_0 : i32, i32, i32
  }
  func.func @transform_4(%arg0: i32, %arg1: i32, %arg2: memref<2xi32, #tpu.memory_space<smem>>) -> (i32, i32, i32) {
    %c0_i32 = arith.constant 0 : i32
    %c0_i32_0 = arith.constant 0 : i32
    %c0_i32_1 = arith.constant 0 : i32
    return %arg1, %c0_i32, %c0_i32_0 : i32, i32, i32
  }
  func.func @transform_5(%arg0: i32, %arg1: i32, %arg2: memref<2xi32, #tpu.memory_space<smem>>) -> (i32, i32, i32) {
    %c0_i32 = arith.constant 0 : i32
    %c0_i32_0 = arith.constant 0 : i32
    %c0_i32_1 = arith.constant 0 : i32
    return %arg1, %c0_i32, %c0_i32_0 : i32, i32, i32
  }
  func.func @transform_6(%arg0: i32, %arg1: i32, %arg2: memref<2xi32, #tpu.memory_space<smem>>) -> (i32, i32) {
    %c0_i32 = arith.constant 0 : i32
    %c0_i32_0 = arith.constant 0 : i32
    %c0_i32_1 = arith.constant 0 : i32
    return %c0_i32, %c0_i32_0 : i32, i32
  }
  func.func @transform_7(%arg0: i32, %arg1: i32, %arg2: memref<2xi32, #tpu.memory_space<smem>>) -> (i32, i32) {
    %c0_i32 = arith.constant 0 : i32
    %c0_i32_0 = arith.constant 0 : i32
    %c0_i32_1 = arith.constant 0 : i32
    return %c0_i32, %c0_i32_0 : i32, i32
  }
  func.func @transform_8(%arg0: i32, %arg1: i32, %arg2: memref<2xi32, #tpu.memory_space<smem>>) -> (i32, i32, i32) {
    %c0_i32 = arith.constant 0 : i32
    %c0_i32_0 = arith.constant 0 : i32
    %c0_i32_1 = arith.constant 0 : i32
    return %arg0, %c0_i32, %c0_i32_0 : i32, i32, i32
  }
}

</mosaic_0001>

<llo_original>
// kernel: encode_text.1
$region0: #{encode_text.1}
  #allocation0 [shape = 'u32[]', space=smem, size = 0x4, offset = 0x4, fixed_abs, tag = 'smem constant byte address 0x4 - core index']
  #allocation1 [shape = 'u32[72,128]{1,0:T(1,128)}', space=vmem, size = 0x9000, scoped, tag = 'internal scratch']
  #allocation2 [shape = 'f32[8,32]{1,0:T(8,128)}', space=vmem, size = 0x1000, scoped, tag = 'scratch operand']
  #allocation3 [shape = 's32[1]{0}', space=sflag, size = 0x4, scoped, tag = 'scoped memory for encode_text.1']
  #allocation4 [shape = 'u8[512]{0}', space=smem, size = 0x200, scoped, tag = 'prefetched SMEM operand 0']
  %s0 = inlined_call_operand.vmem [shape: s32[2], index: 0, kind: input, shape index: {}]
  %s1 = inlined_call_operand.vmem [shape: f32[2,8,32], index: 1, kind: input, shape index: {}]
  %s2 = inlined_call_operand.vmem [shape: f32[2,8,128], index: 2, kind: input, shape index: {}]
  %s3 = inlined_call_operand.vmem [shape: bf16[2,32,96], index: 3, kind: input, shape index: {}]
  %s4 = inlined_call_operand.vmem [shape: bf16[2,32,32], index: 4, kind: input, shape index: {}]
  %s5 = inlined_call_operand.vmem [shape: bf16[2,32,128], index: 5, kind: input, shape index: {}]
  %s6 = inlined_call_operand.vmem [shape: bf16[2,128,32], index: 6, kind: input, shape index: {}]
  %s7 = inlined_call_operand.vmem [shape: f32[2,32], index: 7, kind: input, shape index: {}]
  %s8 = inlined_call_operand.vmem [shape: bf16[32,128], index: 8, kind: input, shape index: {}]
  %s9 = inlined_call_operand.vmem [shape: f32[2,8,128], index: 9, kind: output, shape index: {}]
  %s10 = sld [smem:[#allocation0]]
  $region73: #{encode_text.1} parent=0
    _
  %s12 = ssub.s32 1, %s10
  %s13 = scalar_select 0, %s12, %s10
  %s15 = sshll.u32 %s0, 4
  %s16 = int_to_ptr.vmem [resolvable:$true] %s15
  %18 = dma.vmem_to_smem %s16, 16, [#allocation4], [#allocation3]
  %20 = dma.done [#allocation3], 16
  %21 = sfence
  loop: start=0, step=1, limit=6
  $region2: #{encode_text.1} parent=0 // loop_pre_header
    _
  $region3: #{encode_text.1} parent=0 // loop_header
    %s23 = sphi 0, %s27
    %p24 = scmp.ge.s32.totalorder %s23, 6
    %s30 = sphi 0, %s42
    %s31 = sphi 0, %s38
    %s32 = sphi 0, %s30
    %s33 = sphi 0, %s31
    %s34 = sphi 0, %s32
    %s35 = sphi 0, %s33
    %s45 = sphi 0, %s47
    %s48 = sphi 0, %s45
    %s49 = sphi 0, %s48
    %s65 = sphi 0, %s49
    %s71 = sphi 0, %s73
    %s74 = sphi 0, %s71
    %s75 = sphi 0, %s74
    %s91 = sphi 0, %s75
    %s97 = sphi 0, %s99
    %s100 = sphi 0, %s97
    %s101 = sphi 0, %s100
    %s117 = sphi 0, %s101
    %s123 = sphi 0, %s125
    %s126 = sphi 0, %s123
    %s127 = sphi 0, %s126
    %s143 = sphi 0, %s127
    %s149 = sphi 0, %s151
    %s152 = sphi 0, %s149
    %s153 = sphi 0, %s152
    %s169 = sphi 0, %s153
    %s175 = sphi 0, %s177
    %s178 = sphi 0, %s175
    %s179 = sphi 0, %s178
    %s195 = sphi 0, %s179
    %s199 = sphi 0, %s199
    %s201 = sphi 0, %s199
    %s202 = sphi 0, %s201
    %s216 = sphi 0, %s202
    %s220 = sphi 0, %s220
    %s222 = sphi 0, %s220
    %s223 = sphi 0, %s222
    %s237 = sphi 0, %s223
    %s243 = sphi 0, %s245
    %s246 = sphi 0, %s243
    %s247 = sphi 0, %s246
    %s263 = sphi 0, %s247
  $region4: #{encode_text.1} parent=0 // loop_header_branch
    %26 = sbr.rel (%p24) target = $region8
  $region5: #{encode_text.1} parent=0 // loop_body
    %s28 = ssub.s32 %s23, 1
    %s29 = ssub.s32 %s23, 2
    %s36 = sadd.s32 1, %s31
    %p37 = scmp.ge.s32.totalorder %s36, 2
    %s38 = scalar_select %p37, 0, %s36
    %s39 = sadd.s32 1, %s30
    %s40 = scalar_select %p37, %s39, %s30
    %p41 = scmp.ge.s32.totalorder %s40, 2
    %s42 = scalar_select %p41, 0, %s40
    %s43 = ssub.s32 %s30, %s42
    %p44 = scmp.eq.s32.totalorder %s43, 0
    %s46 = sadd.s32 %s45, 1
    %s47 = scalar_select %p44, %s45, %s46
    %p50 = pneg %p44
    %p51 = scmp.eq.s32.totalorder %s23, 3
    %p52 = por %p50, %p51
    %p53 = scmp.ne.s32.totalorder %s45, %s48
    %p54 = scmp.eq.s32.totalorder %s23, 0
    %p55 = por %p53, %p54
    %p56 = scmp.ne.s32.totalorder %s45, %s48
    %p57 = scmp.eq.s32.totalorder %s28, 3
    %p58 = por %p56, %p57
    %p59 = scmp.ne.s32.totalorder %s48, %s49
    %p60 = scmp.eq.s32.totalorder %s28, 0
    %p61 = por %p59, %p60
    %p62 = scmp.ne.s32.totalorder %s48, %s49
    %p63 = scmp.eq.s32.totalorder %s29, 3
    %p64 = por %p62, %p63
    %p66 = scmp.ne.s32.totalorder %s49, %s65
    %p67 = scmp.eq.s32.totalorder %s29, 0
    %p68 = por %p66, %p67
    %s69 = ssub.s32 %s31, %s38
    %p70 = scmp.eq.s32.totalorder %s69, 0
    %s72 = sadd.s32 %s71, 1
    %s73 = scalar_select %p70, %s71, %s72
    %p76 = pneg %p70
    %p77 = scmp.eq.s32.totalorder %s23, 3
    %p78 = por %p76, %p77
    %p79 = scmp.ne.s32.totalorder %s71, %s74
    %p80 = scmp.eq.s32.totalorder %s23, 0
    %p81 = por %p79, %p80
    %p82 = scmp.ne.s32.totalorder %s71, %s74
    %p83 = scmp.eq.s32.totalorder %s28, 3
    %p84 = por %p82, %p83
    %p85 = scmp.ne.s32.totalorder %s74, %s75
    %p86 = scmp.eq.s32.totalorder %s28, 0
    %p87 = por %p85, %p86
    %p88 = scmp.ne.s32.totalorder %s74, %s75
    %p89 = scmp.eq.s32.totalorder %s29, 3
    %p90 = por %p88, %p89
    %p92 = scmp.ne.s32.totalorder %s75, %s91
    %p93 = scmp.eq.s32.totalorder %s29, 0
    %p94 = por %p92, %p93
    %s95 = ssub.s32 %s31, %s38
    %p96 = scmp.eq.s32.totalorder %s95, 0
    %s98 = sadd.s32 %s97, 1
    %s99 = scalar_select %p96, %s97, %s98
    %p102 = pneg %p96
    %p103 = scmp.eq.s32.totalorder %s23, 3
    %p104 = por %p102, %p103
    %p105 = scmp.ne.s32.totalorder %s97, %s100
    %p106 = scmp.eq.s32.totalorder %s23, 0
    %p107 = por %p105, %p106
    %p108 = scmp.ne.s32.totalorder %s97, %s100
    %p109 = scmp.eq.s32.totalorder %s28, 3
    %p110 = por %p108, %p109
    %p111 = scmp.ne.s32.totalorder %s100, %s101
    %p112 = scmp.eq.s32.totalorder %s28, 0
    %p113 = por %p111, %p112
    %p114 = scmp.ne.s32.totalorder %s100, %s101
    %p115 = scmp.eq.s32.totalorder %s29, 3
    %p116 = por %p114, %p115
    %p118 = scmp.ne.s32.totalorder %s101, %s117
    %p119 = scmp.eq.s32.totalorder %s29, 0
    %p120 = por %p118, %p119
    %s121 = ssub.s32 %s31, %s38
    %p122 = scmp.eq.s32.totalorder %s121, 0
    %s124 = sadd.s32 %s123, 1
    %s125 = scalar_select %p122, %s123, %s124
    %p128 = pneg %p122
    %p129 = scmp.eq.s32.totalorder %s23, 3
    %p130 = por %p128, %p129
    %p131 = scmp.ne.s32.totalorder %s123, %s126
    %p132 = scmp.eq.s32.totalorder %s23, 0
    %p133 = por %p131, %p132
    %p134 = scmp.ne.s32.totalorder %s123, %s126
    %p135 = scmp.eq.s32.totalorder %s28, 3
    %p136 = por %p134, %p135
    %p137 = scmp.ne.s32.totalorder %s126, %s127
    %p138 = scmp.eq.s32.totalorder %s28, 0
    %p139 = por %p137, %p138
    %p140 = scmp.ne.s32.totalorder %s126, %s127
    %p141 = scmp.eq.s32.totalorder %s29, 3
    %p142 = por %p140, %p141
    %p144 = scmp.ne.s32.totalorder %s127, %s143
    %p145 = scmp.eq.s32.totalorder %s29, 0
    %p146 = por %p144, %p145
    %s147 = ssub.s32 %s31, %s38
    %p148 = scmp.eq.s32.totalorder %s147, 0
    %s150 = sadd.s32 %s149, 1
    %s151 = scalar_select %p148, %s149, %s150
    %p154 = pneg %p148
    %p155 = scmp.eq.s32.totalorder %s23, 3
    %p156 = por %p154, %p155
    %p157 = scmp.ne.s32.totalorder %s149, %s152
    %p158 = scmp.eq.s32.totalorder %s23, 0
    %p159 = por %p157, %p158
    %p160 = scmp.ne.s32.totalorder %s149, %s152
    %p161 = scmp.eq.s32.totalorder %s28, 3
    %p162 = por %p160, %p161
    %p163 = scmp.ne.s32.totalorder %s152, %s153
    %p164 = scmp.eq.s32.totalorder %s28, 0
    %p165 = por %p163, %p164
    %p166 = scmp.ne.s32.totalorder %s152, %s153
    %p167 = scmp.eq.s32.totalorder %s29, 3
    %p168 = por %p166, %p167
    %p170 = scmp.ne.s32.totalorder %s153, %s169
    %p171 = scmp.eq.s32.totalorder %s29, 0
    %p172 = por %p170, %p171
    %s173 = ssub.s32 %s31, %s38
    %p174 = scmp.eq.s32.totalorder %s173, 0
    %s176 = sadd.s32 %s175, 1
    %s177 = scalar_select %p174, %s175, %s176
    %p180 = pneg %p174
    %p181 = scmp.eq.s32.totalorder %s23, 3
    %p182 = por %p180, %p181
    %p183 = scmp.ne.s32.totalorder %s175, %s178
    %p184 = scmp.eq.s32.totalorder %s23, 0
    %p185 = por %p183, %p184
    %p186 = scmp.ne.s32.totalorder %s175, %s178
    %p187 = scmp.eq.s32.totalorder %s28, 3
    %p188 = por %p186, %p187
    %p189 = scmp.ne.s32.totalorder %s178, %s179
    %p190 = scmp.eq.s32.totalorder %s28, 0
    %p191 = por %p189, %p190
    %p192 = scmp.ne.s32.totalorder %s178, %s179
    %p193 = scmp.eq.s32.totalorder %s29, 3
    %p194 = por %p192, %p193
    %p196 = scmp.ne.s32.totalorder %s179, %s195
    %p197 = scmp.eq.s32.totalorder %s29, 0
    %p198 = por %p196, %p197
    %s200 = sadd.s32 %s199, 1
    %p203 = scmp.eq.s32.totalorder %s23, 3
    %p204 = scmp.ne.s32.totalorder %s199, %s201
    %p205 = scmp.eq.s32.totalorder %s23, 0
    %p206 = por %p204, %p205
    %p207 = scmp.ne.s32.totalorder %s199, %s201
    %p208 = scmp.eq.s32.totalorder %s28, 3
    %p209 = por %p207, %p208
    %p210 = scmp.ne.s32.totalorder %s201, %s202
    %p211 = scmp.eq.s32.totalorder %s28, 0
    %p212 = por %p210, %p211
    %p213 = scmp.ne.s32.totalorder %s201, %s202
    %p214 = scmp.eq.s32.totalorder %s29, 3
    %p215 = por %p213, %p214
    %p217 = scmp.ne.s32.totalorder %s202, %s216
    %p218 = scmp.eq.s32.totalorder %s29, 0
    %p219 = por %p217, %p218
    %s221 = sadd.s32 %s220, 1
    %p224 = scmp.eq.s32.totalorder %s23, 3
    %p225 = scmp.ne.s32.totalorder %s220, %s222
    %p226 = scmp.eq.s32.totalorder %s23, 0
    %p227 = por %p225, %p226
    %p228 = scmp.ne.s32.totalorder %s220, %s222
    %p229 = scmp.eq.s32.totalorder %s28, 3
    %p230 = por %p228, %p229
    %p231 = scmp.ne.s32.totalorder %s222, %s223
    %p232 = scmp.eq.s32.totalorder %s28, 0
    %p233 = por %p231, %p232
    %p234 = scmp.ne.s32.totalorder %s222, %s223
    %p235 = scmp.eq.s32.totalorder %s29, 3
    %p236 = por %p234, %p235
    %p238 = scmp.ne.s32.totalorder %s223, %s237
    %p239 = scmp.eq.s32.totalorder %s29, 0
    %p240 = por %p238, %p239
    %s241 = ssub.s32 %s30, %s42
    %p242 = scmp.eq.s32.totalorder %s241, 0
    %s244 = sadd.s32 %s243, 1
    %s245 = scalar_select %p242, %s243, %s244
    %p248 = pneg %p242
    %p249 = scmp.eq.s32.totalorder %s23, 3
    %p250 = por %p248, %p249
    %p251 = scmp.ne.s32.totalorder %s243, %s246
    %p252 = scmp.eq.s32.totalorder %s23, 0
    %p253 = por %p251, %p252
    %p254 = scmp.ne.s32.totalorder %s243, %s246
    %p255 = scmp.eq.s32.totalorder %s28, 3
    %p256 = por %p254, %p255
    %p257 = scmp.ne.s32.totalorder %s246, %s247
    %p258 = scmp.eq.s32.totalorder %s28, 0
    %p259 = por %p257, %p258
    %p260 = scmp.ne.s32.totalorder %s246, %s247
    %p261 = scmp.eq.s32.totalorder %s29, 3
    %p262 = por %p260, %p261
    %p264 = scmp.ne.s32.totalorder %s247, %s263
    %p265 = scmp.eq.s32.totalorder %s29, 0
    %p266 = por %p264, %p265
    %p267 = scmp.le.s32.totalorder 1, %s23
    %p268 = scmp.lt.s32.totalorder %s23, 5
    %p269 = pnand %p267, %p268
    %p270 = pneg %p269
    // Predicated region
    $region9: #{encode_text.1} parent=5 // pred_check
      _
    $region10: #{encode_text.1} parent=5 // pred_check_branch
      %272 = sbr.rel (%p269) target = $region12
    $region11: #{encode_text.1} parent=5 // pred_region
      %s273 = ssub.s32 %s23, 1
      // Predicated region
      $region13: #{encode_text.1} parent=11 // pred_check
        %p274 = pneg %p212
      $region14: #{encode_text.1} parent=11 // pred_check_branch
        %276 = sbr.rel (%p274) target = $region16
      $region15: #{encode_text.1} parent=11 // pred_region
        _
      $region16: #{encode_text.1} parent=11 // pred_fallthru
        _
      // Predicated region
      $region17: #{encode_text.1} parent=11 // pred_check
        %p277 = pneg %p233
      $region18: #{encode_text.1} parent=11 // pred_check_branch
        %279 = sbr.rel (%p277) target = $region20
      $region19: #{encode_text.1} parent=11 // pred_region
        _
      $region20: #{encode_text.1} parent=11 // pred_fallthru
        _
    $region12: #{encode_text.1} parent=5 // pred_fallthru
      _
    %p280 = scmp.lt.s32.totalorder %s23, 4
    // Predicated region
    $region21: #{encode_text.1} parent=5 // pred_check
      %p281 = pneg %p280
    $region22: #{encode_text.1} parent=5 // pred_check_branch
      %283 = sbr.rel (%p281) target = $region24
    $region23: #{encode_text.1} parent=5 // pred_region
      // Predicated region
      $region25: #{encode_text.1} parent=23 // pred_check
        %p284 = pneg %p55
      $region26: #{encode_text.1} parent=23 // pred_check_branch
        %286 = sbr.rel (%p284) target = $region28
      $region27: #{encode_text.1} parent=23 // pred_region
        %p287 = scmp.lt.s32.totalorder %s30, 1
        %s288 = scalar_select %p287, %s30, 1
        %s289 = smul.addr %s288, 8
        %s290 = scalar_lea.vmem %s1, %s289
      $region28: #{encode_text.1} parent=23 // pred_fallthru
        _
      // Predicated region
      $region29: #{encode_text.1} parent=23 // pred_check
        %p291 = pneg %p81
      $region30: #{encode_text.1} parent=23 // pred_check_branch
        %293 = sbr.rel (%p291) target = $region32
      $region31: #{encode_text.1} parent=23 // pred_region
        %p294 = scmp.lt.s32.totalorder %s31, 1
        %s295 = scalar_select %p294, %s31, 1
        %s296 = smul.addr %s295, 8
        %s297 = scalar_lea.vmem %s2, %s296
      $region32: #{encode_text.1} parent=23 // pred_fallthru
        _
      // Predicated region
      $region33: #{encode_text.1} parent=23 // pred_check
        %p298 = pneg %p107
      $region34: #{encode_text.1} parent=23 // pred_check_branch
        %300 = sbr.rel (%p298) target = $region36
      $region35: #{encode_text.1} parent=23 // pred_region
        %p301 = scmp.lt.s32.totalorder %s31, 1
        %s302 = scalar_select %p301, %s31, 1
        %s303 = smul.addr %s302, 4
        %s304 = smul.addr %s303, 4
        %s305 = scalar_lea.vmem %s3, %s304
      $region36: #{encode_text.1} parent=23 // pred_fallthru
        _
      // Predicated region
      $region37: #{encode_text.1} parent=23 // pred_check
        %p306 = pneg %p133
      $region38: #{encode_text.1} parent=23 // pred_check_branch
        %308 = sbr.rel (%p306) target = $region40
      $region39: #{encode_text.1} parent=23 // pred_region
        %p309 = scmp.lt.s32.totalorder %s31, 1
        %s310 = scalar_select %p309, %s31, 1
        %s311 = smul.addr %s310, 4
        %s312 = smul.addr %s311, 4
        %s313 = scalar_lea.vmem %s4, %s312
      $region40: #{encode_text.1} parent=23 // pred_fallthru
        _
      // Predicated region
      $region41: #{encode_text.1} parent=23 // pred_check
        %p314 = pneg %p159
      $region42: #{encode_text.1} parent=23 // pred_check_branch
        %316 = sbr.rel (%p314) target = $region44
      $region43: #{encode_text.1} parent=23 // pred_region
        %p317 = scmp.lt.s32.totalorder %s31, 1
        %s318 = scalar_select %p317, %s31, 1
        %s319 = smul.addr %s318, 4
        %s320 = smul.addr %s319, 4
        %s321 = scalar_lea.vmem %s5, %s320
      $region44: #{encode_text.1} parent=23 // pred_fallthru
        _
      // Predicated region
      $region45: #{encode_text.1} parent=23 // pred_check
        %p322 = pneg %p185
      $region46: #{encode_text.1} parent=23 // pred_check_branch
        %324 = sbr.rel (%p322) target = $region48
      $region47: #{encode_text.1} parent=23 // pred_region
        %p325 = scmp.lt.s32.totalorder %s31, 1
        %s326 = scalar_select %p325, %s31, 1
        %s327 = smul.addr %s326, 16
        %s328 = smul.addr %s327, 4
        %s329 = scalar_lea.vmem %s6, %s328
      $region48: #{encode_text.1} parent=23 // pred_fallthru
        _
    $region24: #{encode_text.1} parent=5 // pred_fallthru
      _
    %p330 = scmp.le.s32.totalorder 1, %s23
    %p331 = scmp.lt.s32.totalorder %s23, 5
    %p332 = pnand %p330, %p331
    %p333 = pneg %p332
    // Predicated region
    $region49: #{encode_text.1} parent=5 // pred_check
      _
    $region50: #{encode_text.1} parent=5 // pred_check_branch
      %335 = sbr.rel (%p332) target = $region52
    $region51: #{encode_text.1} parent=5 // pred_region
      %s336 = ssub.s32 %s23, 1
      %p337 = scmp.lt.s32.totalorder %s32, 1
      %s338 = scalar_select %p337, %s32, 1
      %s339 = smul.addr %s338, 8
      %s340 = scalar_lea.vmem %s1, %s339
      %p341 = pneg %p61
      %p342 = pneg %p58
      %p343 = scmp.lt.s32.totalorder %s33, 1
      %s344 = scalar_select %p343, %s33, 1
      %s345 = smul.addr %s344, 8
      %s346 = scalar_lea.vmem %s2, %s345
      %p347 = pneg %p87
      %p348 = pneg %p84
      %p349 = scmp.lt.s32.totalorder %s33, 1
      %s350 = scalar_select %p349, %s33, 1
      %s351 = smul.addr %s350, 4
      %s352 = smul.addr %s351, 4
      %s353 = scalar_lea.vmem %s3, %s352
      %p354 = pneg %p113
      %p355 = pneg %p110
      %p356 = scmp.lt.s32.totalorder %s33, 1
      %s357 = scalar_select %p356, %s33, 1
      %s358 = smul.addr %s357, 4
      %s359 = smul.addr %s358, 4
      %s360 = scalar_lea.vmem %s4, %s359
      %p361 = pneg %p139
      %p362 = pneg %p136
      %p363 = scmp.lt.s32.totalorder %s33, 1
      %s364 = scalar_select %p363, %s33, 1
      %s365 = smul.addr %s364, 4
      %s366 = smul.addr %s365, 4
      %s367 = scalar_lea.vmem %s5, %s366
      %p368 = pneg %p165
      %p369 = pneg %p162
      %p370 = scmp.lt.s32.totalorder %s33, 1
      %s371 = scalar_select %p370, %s33, 1
      %s372 = smul.addr %s371, 16
      %s373 = smul.addr %s372, 4
      %s374 = scalar_lea.vmem %s6, %s373
      %p375 = pneg %p191
      %p376 = pneg %p188
      %p377 = pneg %p212
      %p378 = pneg %p209
      %p379 = pneg %p233
      %p380 = pneg %p230
      %p381 = pneg %p259
      %p382 = pneg %p256
      %p383 = scmp.lt.s32.totalorder %s32, 1
      %s384 = scalar_select %p383, %s32, 1
      %s385 = smul.addr %s384, 8
      %s386 = scalar_lea.vmem %s9, %s385
      %p387 = scmp.lt.s32.totalorder %s32, 1
      %s388 = scalar_select %p387, %s32, 1
      %s389 = smul.addr %s388, 8
      %s390 = scalar_lea.vmem %s1, %s389
      %p391 = scmp.lt.s32.totalorder %s33, 1
      %s392 = scalar_select %p391, %s33, 1
      %s393 = smul.addr %s392, 8
      %s394 = scalar_lea.vmem %s2, %s393
      %p395 = scmp.lt.s32.totalorder %s33, 1
      %s396 = scalar_select %p395, %s33, 1
      %s397 = smul.addr %s396, 4
      %s398 = smul.addr %s397, 4
      %s399 = scalar_lea.vmem %s3, %s398
      %p400 = scmp.lt.s32.totalorder %s33, 1
      %s401 = scalar_select %p400, %s33, 1
      %s402 = smul.addr %s401, 4
      %s403 = smul.addr %s402, 4
      %s404 = scalar_lea.vmem %s4, %s403
      %p405 = scmp.lt.s32.totalorder %s33, 1
      %s406 = scalar_select %p405, %s33, 1
      %s407 = smul.addr %s406, 4
      %s408 = smul.addr %s407, 4
      %s409 = scalar_lea.vmem %s5, %s408
      %p410 = scmp.lt.s32.totalorder %s33, 1
      %s411 = scalar_select %p410, %s33, 1
      %s412 = smul.addr %s411, 16
      %s413 = smul.addr %s412, 4
      %s414 = scalar_lea.vmem %s6, %s413
      %p415 = scmp.lt.s32.totalorder %s32, 1
      %s416 = scalar_select %p415, %s32, 1
      %s417 = smul.addr %s416, 8
      %s418 = scalar_lea.vmem %s9, %s417
      %p420 = scmp.eq.s32.totalorder %s33, 0
      // Predicated region
      $region53: #{encode_text.1} parent=51 // pred_check
        %p421 = pneg %p420
      $region54: #{encode_text.1} parent=51 // pred_check_branch
        %423 = sbr.rel (%p421) target = $region56
      $region55: #{encode_text.1} parent=51 // pred_region
        %v424 = vld [vmem:[%s390] sm:$0xff]
        %vm425 = vcmask 261120
        %426 = vst.msk [vmem:[#allocation2] sm:$0xff] %vm425, %v424
      $region56: #{encode_text.1} parent=51 // pred_fallthru
        _
      %v427 = vld [vmem:[#allocation2] sm:$0xff]
      %v428 = vld [vmem:[%s394] sm:$0xff]
      %vm429 = vcmask 261120
      %v430 = vsel %vm429, %v427, 0.0
      %431 = vadd.xlane.f32.xlu0 %v430
      %v432 = vpop.xlane.xlu0 %431
      %v433 = vrcp.pop 32.0
      %v434 = vmul.f32 32.0, %v433
      %v435 = vsub.f32 1.0, %v434
      %v436 = vmul.f32 %v433, %v435
      %v437 = vadd.f32 %v433, %v436
      %vm438 = vweird.f32 %v433
      %v439 = vsel %vm438, %v433, %v437
      %v440 = vmul.f32 %v432, %v439
      %v441 = vsub.f32 %v427, %v440
      %v442 = vmul.f32 %v441, %v441
      %v443 = vsel %vm429, %v442, 0.0
      %444 = vadd.xlane.f32.xlu0 %v443
      %v445 = vpop.xlane.xlu0 %444
      %v446 = vmul.f32 %v445, %v439
      %v447 = vadd.f32 %v446, 1e-05
      %v448 = vrsqrt.pop %v447
      %v449 = vmul.f32 %v448, %v447
      %v450 = vmul.f32 %v449, %v448
      %v451 = vmul.f32 0.5, %v450
      %v452 = vsub.f32 1.5, %v451
      %v453 = vmul.f32 %v448, %v452
      %vm454 = vweird.f32 %v447
      %vm455 = vweird.f32 %v448
      %vm456 = vmor %vm454, %vm455
      %v457 = vsel %vm456, %v448, %v453
      %v458 = vmul.f32 %v441, %v457
      %v459 = vperm.slane %v428, 0
      %v460 = vmul.f32 %v458, %v459
      %v461 = vperm.slane %v428, 1
      %v462 = vadd.f32 %v460, %v461
      %v463 = vpack.c.bf16 %v462, %v462
      %v464 = vld [vmem:[%s399] sm:$0xf]
      %v465 = vld [vmem:[%s399 + $0x4] sm:$0xf]
      %v466 = vld [vmem:[%s399 + $0x8] sm:$0xf]
      %v467 = vld [vmem:[%s399 + $0xc] sm:$0xf]
      %v468 = vperm.slane %v428, 2
      %v473 = vunpack.c.l.b16 %v464
      %v474 = vunpack.c.l.b16 %v465
      %v475 = vunpack.c.l.b16 %v466
      %v476 = vunpack.c.l.b16 %v467
      %v477 = vpack.c.b16 %v474, %v473
      %v478 = vpack.c.b16 %v476, %v475
      %v482 = vsel %vm429, %v463, 0
      %484 = vmatpush.bf16.msra.mxu0 0
      %485 = vmatpush.bf16.msra.mxu0 0
      %486 = vmatpush.bf16.msra.mxu0 0
      %487 = vmatpush.bf16.msra.mxu0 0
      %488 = vmatpush.bf16.msra.mxu0 0
      %489 = vmatpush.bf16.msra.mxu0 0
      %490 = vmatpush.bf16.msra.mxu0 %v478
      %491 = vmatpush.bf16.msra.mxu0 %v477
      %492 = vmatmul.bf16.gmra.mxu0 %v482
      %v493 = vpop.f32.mrf.mxu0
      %v494 = vadd.f32 %v468, %v493
      %v495 = vpop.f32.mrf.mxu0
      %496 = vdwg.mxu0
      %v497 = vlaneseq
      %v498 = vshrl.u32 %v497, 7
      %v499 = vlaneseq
      %v500 = vand.u32 %v499, 127
      %vm501 = vcmp.le.s32.totalorder %v500, %v498
      %v502 = vsel %vm501, 0.0, -1e+30
      %v503 = vpack.c.bf16 %v494, %v494
      %505 = vrot.lane.b32.xlu0 %v503, 96
      %v506 = vpop.permute.xlu0 %505
      %vm507 = vcmask 64512
      %v509 = vsel %vm507, %v503, 0
      %v512 = vsel %vm507, %v506, 0
      %514 = vmatpush.bf16.xpose.msra.mxu0 0
      %515 = vmatpush.bf16.xpose.msra.mxu0 0
      %516 = vmatpush.bf16.xpose.msra.mxu0 0
      %517 = vmatpush.bf16.xpose.msra.mxu0 0
      %518 = vmatpush.bf16.xpose.msra.mxu0 0
      %519 = vmatpush.bf16.xpose.msra.mxu0 0
      %520 = vmatpush.bf16.xpose.msra.mxu0 0
      %521 = vmatpush.bf16.xpose.msra.mxu0 %v512
      %522 = vmatmul.bf16.gmra.mxu0 %v509
      %v523 = vpop.f32.mrf.mxu0
      %v524 = vadd.f32 %v502, %v523
      %v525 = vpop.f32.mrf.mxu0
      %526 = vdwg.mxu0
      %v527 = vsel %vm507, %v524, -inf
      %528 = vmax.xlane.f32.xlu0 %v527
      %v529 = vpop.xlane.xlu0 %528
      %v530 = vsub.f32 %v524, %v529
      %v531 = vmul.f32 %v530, 1.442695
      %v532 = vpow.pop %v531
      %v533 = vsel %vm507, %v532, 0.0
      %534 = vadd.xlane.f32.xlu0 %v533
      %v535 = vpop.xlane.xlu0 %534
      %v536 = vrcp.pop %v535
      %v537 = vmul.f32 %v532, %v536
      %v538 = vpack.c.bf16 %v537, %v537
      %539 = vrot.lane.b32.xlu0 %v503, 64
      %v540 = vpop.permute.xlu0 %539
      %v542 = vsel %vm507, %v538, 0
      %vm544 = vcmask 1043456
      %v546 = vsel %vm544, %v540, 0
      %548 = vmatpush.bf16.msra.mxu0 0
      %549 = vmatpush.bf16.msra.mxu0 0
      %550 = vmatpush.bf16.msra.mxu0 0
      %551 = vmatpush.bf16.msra.mxu0 0
      %552 = vmatpush.bf16.msra.mxu0 0
      %553 = vmatpush.bf16.msra.mxu0 0
      %554 = vmatpush.bf16.msra.mxu0 0
      %555 = vmatpush.bf16.msra.mxu0 %v546
      %556 = vmatmul.bf16.gmra.mxu0 %v542
      %v557 = vpop.f32.mrf.mxu0
      %v558 = vadd.f32 0.0, %v557
      %v559 = vpop.f32.mrf.mxu0
      %560 = vdwg.mxu0
      %561 = vrot.lane.b32.xlu0 %v503, 120
      %v562 = vpop.permute.xlu0 %561
      %563 = vrot.lane.b32.xlu0 %v503, 88
      %v564 = vpop.permute.xlu0 %563
      %v566 = vsel %vm507, %v562, 0
      %v569 = vsel %vm507, %v564, 0
      %571 = vmatpush.bf16.xpose.msra.mxu0 0
      %572 = vmatpush.bf16.xpose.msra.mxu0 0
      %573 = vmatpush.bf16.xpose.msra.mxu0 0
      %574 = vmatpush.bf16.xpose.msra.mxu0 0
      %575 = vmatpush.bf16.xpose.msra.mxu0 0
      %576 = vmatpush.bf16.xpose.msra.mxu0 0
      %577 = vmatpush.bf16.xpose.msra.mxu0 0
      %578 = vmatpush.bf16.xpose.msra.mxu0 %v569
      %579 = vmatmul.bf16.gmra.mxu0 %v566
      %v580 = vpop.f32.mrf.mxu0
      %v581 = vadd.f32 %v502, %v580
      %v582 = vpop.f32.mrf.mxu0
      %583 = vdwg.mxu0
      %v584 = vsel %vm507, %v581, -inf
      %585 = vmax.xlane.f32.xlu0 %v584
      %v586 = vpop.xlane.xlu0 %585
      %v587 = vsub.f32 %v581, %v586
      %v588 = vmul.f32 %v587, 1.442695
      %v589 = vpow.pop %v588
      %v590 = vsel %vm507, %v589, 0.0
      %591 = vadd.xlane.f32.xlu0 %v590
      %v592 = vpop.xlane.xlu0 %591
      %v593 = vrcp.pop %v592
      %v594 = vmul.f32 %v589, %v593
      %v595 = vpack.c.bf16 %v594, %v594
      %596 = vrot.lane.b32.xlu0 %v503, 56
      %v597 = vpop.permute.xlu0 %596
      %v599 = vsel %vm507, %v595, 0
      %v602 = vsel %vm544, %v597, 0
      %604 = vmatpush.bf16.msra.mxu0 0
      %605 = vmatpush.bf16.msra.mxu0 0
      %606 = vmatpush.bf16.msra.mxu0 0
      %607 = vmatpush.bf16.msra.mxu0 0
      %608 = vmatpush.bf16.msra.mxu0 0
      %609 = vmatpush.bf16.msra.mxu0 0
      %610 = vmatpush.bf16.msra.mxu0 0
      %611 = vmatpush.bf16.msra.mxu0 %v602
      %612 = vmatmul.bf16.gmra.mxu0 %v599
      %v613 = vpop.f32.mrf.mxu0
      %v614 = vadd.f32 0.0, %v613
      %v615 = vpop.f32.mrf.mxu0
      %616 = vdwg.mxu0
      %617 = vrot.lane.b32.xlu0 %v503, 112
      %v618 = vpop.permute.xlu0 %617
      %619 = vrot.lane.b32.xlu0 %v503, 80
      %v620 = vpop.permute.xlu0 %619
      %v622 = vsel %vm507, %v618, 0
      %v625 = vsel %vm507, %v620, 0
      %627 = vmatpush.bf16.xpose.msra.mxu0 0
      %628 = vmatpush.bf16.xpose.msra.mxu0 0
      %629 = vmatpush.bf16.xpose.msra.mxu0 0
      %630 = vmatpush.bf16.xpose.msra.mxu0 0
      %631 = vmatpush.bf16.xpose.msra.mxu0 0
      %632 = vmatpush.bf16.xpose.msra.mxu0 0
      %633 = vmatpush.bf16.xpose.msra.mxu0 0
      %634 = vmatpush.bf16.xpose.msra.mxu0 %v625
      %635 = vmatmul.bf16.gmra.mxu0 %v622
      %v636 = vpop.f32.mrf.mxu0
      %v637 = vadd.f32 %v502, %v636
      %v638 = vpop.f32.mrf.mxu0
      %639 = vdwg.mxu0
      %v640 = vsel %vm507, %v637, -inf
      %641 = vmax.xlane.f32.xlu0 %v640
      %v642 = vpop.xlane.xlu0 %641
      %v643 = vsub.f32 %v637, %v642
      %v644 = vmul.f32 %v643, 1.442695
      %v645 = vpow.pop %v644
      %v646 = vsel %vm507, %v645, 0.0
      %647 = vadd.xlane.f32.xlu0 %v646
      %v648 = vpop.xlane.xlu0 %647
      %v649 = vrcp.pop %v648
      %v650 = vmul.f32 %v645, %v649
      %v651 = vpack.c.bf16 %v650, %v650
      %652 = vrot.lane.b32.xlu0 %v503, 48
      %v653 = vpop.permute.xlu0 %652
      %v655 = vsel %vm507, %v651, 0
      %v658 = vsel %vm544, %v653, 0
      %660 = vmatpush.bf16.msra.mxu0 0
      %661 = vmatpush.bf16.msra.mxu0 0
      %662 = vmatpush.bf16.msra.mxu0 0
      %663 = vmatpush.bf16.msra.mxu0 0
      %664 = vmatpush.bf16.msra.mxu0 0
      %665 = vmatpush.bf16.msra.mxu0 0
      %666 = vmatpush.bf16.msra.mxu0 0
      %667 = vmatpush.bf16.msra.mxu0 %v658
      %668 = vmatmul.bf16.gmra.mxu0 %v655
      %v669 = vpop.f32.mrf.mxu0
      %v670 = vadd.f32 0.0, %v669
      %v671 = vpop.f32.mrf.mxu0
      %672 = vdwg.mxu0
      %673 = vrot.lane.b32.xlu0 %v503, 104
      %v674 = vpop.permute.xlu0 %673
      %675 = vrot.lane.b32.xlu0 %v503, 72
      %v676 = vpop.permute.xlu0 %675
      %v678 = vsel %vm507, %v674, 0
      %v681 = vsel %vm507, %v676, 0
      %683 = vmatpush.bf16.xpose.msra.mxu0 0
      %684 = vmatpush.bf16.xpose.msra.mxu0 0
      %685 = vmatpush.bf16.xpose.msra.mxu0 0
      %686 = vmatpush.bf16.xpose.msra.mxu0 0
      %687 = vmatpush.bf16.xpose.msra.mxu0 0
      %688 = vmatpush.bf16.xpose.msra.mxu0 0
      %689 = vmatpush.bf16.xpose.msra.mxu0 0
      %690 = vmatpush.bf16.xpose.msra.mxu0 %v681
      %691 = vmatmul.bf16.gmra.mxu0 %v678
      %v692 = vpop.f32.mrf.mxu0
      %v693 = vadd.f32 %v502, %v692
      %v694 = vpop.f32.mrf.mxu0
      %695 = vdwg.mxu0
      %v696 = vsel %vm507, %v693, -inf
      %697 = vmax.xlane.f32.xlu0 %v696
      %v698 = vpop.xlane.xlu0 %697
      %v699 = vsub.f32 %v693, %v698
      %v700 = vmul.f32 %v699, 1.442695
      %v701 = vpow.pop %v700
      %v702 = vsel %vm507, %v701, 0.0
      %703 = vadd.xlane.f32.xlu0 %v702
      %v704 = vpop.xlane.xlu0 %703
      %v705 = vrcp.pop %v704
      %v706 = vmul.f32 %v701, %v705
      %v707 = vpack.c.bf16 %v706, %v706
      %708 = vrot.lane.b32.xlu0 %v503, 40
      %v709 = vpop.permute.xlu0 %708
      %v711 = vsel %vm507, %v707, 0
      %v714 = vsel %vm544, %v709, 0
      %716 = vmatpush.bf16.msra.mxu0 0
      %717 = vmatpush.bf16.msra.mxu0 0
      %718 = vmatpush.bf16.msra.mxu0 0
      %719 = vmatpush.bf16.msra.mxu0 0
      %720 = vmatpush.bf16.msra.mxu0 0
      %721 = vmatpush.bf16.msra.mxu0 0
      %722 = vmatpush.bf16.msra.mxu0 0
      %723 = vmatpush.bf16.msra.mxu0 %v714
      %724 = vmatmul.bf16.gmra.mxu0 %v711
      %v725 = vpop.f32.mrf.mxu0
      %v726 = vadd.f32 0.0, %v725
      %v727 = vpop.f32.mrf.mxu0
      %728 = vdwg.mxu0
      %730 = vrot.lane.b32.xlu0 %v614, 8
      %v731 = vpop.permute.xlu0 %730
      %734 = vrot.lane.b32.xlu0 %v670, 16
      %v735 = vpop.permute.xlu0 %734
      %738 = vrot.lane.b32.xlu0 %v726, 24
      %v739 = vpop.permute.xlu0 %738
      %v741 = vsel %vm507, %v558, %v731
      %vm742 = vcmask 130048
      %v743 = vsel %vm742, %v741, %v735
      %vm744 = vcmask 195584
      %v745 = vsel %vm744, %v743, %v739
      %v746 = vpack.c.bf16 %v745, %v745
      %v747 = vld [vmem:[%s404] sm:$0xf]
      %v748 = vld [vmem:[%s404 + $0x4] sm:$0xf]
      %v749 = vld [vmem:[%s404 + $0x8] sm:$0xf]
      %v750 = vld [vmem:[%s404 + $0xc] sm:$0xf]
      %v755 = vunpack.c.l.b16 %v747
      %v756 = vunpack.c.l.b16 %v748
      %v757 = vunpack.c.l.b16 %v749
      %v758 = vunpack.c.l.b16 %v750
      %v759 = vpack.c.b16 %v756, %v755
      %v760 = vpack.c.b16 %v758, %v757
      %v764 = vsel %vm429, %v746, 0
      %766 = vmatpush.bf16.msra.mxu0 0
      %767 = vmatpush.bf16.msra.mxu0 0
      %768 = vmatpush.bf16.msra.mxu0 0
      %769 = vmatpush.bf16.msra.mxu0 0
      %770 = vmatpush.bf16.msra.mxu0 0
      %771 = vmatpush.bf16.msra.mxu0 0
      %772 = vmatpush.bf16.msra.mxu0 %v760
      %773 = vmatpush.bf16.msra.mxu0 %v759
      %774 = vmatmul.bf16.gmra.mxu0 %v764
      %v775 = vpop.f32.mrf.mxu0
      %v776 = vadd.f32 0.0, %v775
      %v777 = vpop.f32.mrf.mxu0
      %778 = vdwg.mxu0
      %v779 = vadd.f32 %v427, %v776
      %v780 = vperm.slane %v428, 3
      %v781 = vadd.f32 %v779, %v780
      %v782 = vsel %vm429, %v781, 0.0
      %783 = vadd.xlane.f32.xlu0 %v782
      %v784 = vpop.xlane.xlu0 %783
      %v785 = vmul.f32 %v784, %v439
      %v786 = vsub.f32 %v781, %v785
      %v787 = vmul.f32 %v786, %v786
      %v788 = vsel %vm429, %v787, 0.0
      %789 = vadd.xlane.f32.xlu0 %v788
      %v790 = vpop.xlane.xlu0 %789
      %v791 = vmul.f32 %v790, %v439
      %v792 = vadd.f32 %v791, 1e-05
      %v793 = vrsqrt.pop %v792
      %v794 = vmul.f32 %v793, %v792
      %v795 = vmul.f32 %v794, %v793
      %v796 = vmul.f32 0.5, %v795
      %v797 = vsub.f32 1.5, %v796
      %v798 = vmul.f32 %v793, %v797
      %vm799 = vweird.f32 %v792
      %vm800 = vweird.f32 %v793
      %vm801 = vmor %vm799, %vm800
      %v802 = vsel %vm801, %v793, %v798
      %v803 = vmul.f32 %v786, %v802
      %v804 = vperm.slane %v428, 4
      %v805 = vmul.f32 %v803, %v804
      %v806 = vperm.slane %v428, 5
      %v807 = vadd.f32 %v805, %v806
      %v808 = vpack.c.bf16 %v807, %v807
      %v809 = vld [vmem:[%s409] sm:$0xf]
      %v810 = vld [vmem:[%s409 + $0x4] sm:$0xf]
      %v811 = vld [vmem:[%s409 + $0x8] sm:$0xf]
      %v812 = vld [vmem:[%s409 + $0xc] sm:$0xf]
      %v813 = vperm.slane %v428, 6
      %v818 = vunpack.c.l.b16 %v809
      %v819 = vunpack.c.l.b16 %v810
      %v820 = vunpack.c.l.b16 %v811
      %v821 = vunpack.c.l.b16 %v812
      %v822 = vpack.c.b16 %v819, %v818
      %v823 = vpack.c.b16 %v821, %v820
      %v827 = vsel %vm429, %v808, 0
      %829 = vmatpush.bf16.msra.mxu0 0
      %830 = vmatpush.bf16.msra.mxu0 0
      %831 = vmatpush.bf16.msra.mxu0 0
      %832 = vmatpush.bf16.msra.mxu0 0
      %833 = vmatpush.bf16.msra.mxu0 0
      %834 = vmatpush.bf16.msra.mxu0 0
      %835 = vmatpush.bf16.msra.mxu0 %v823
      %836 = vmatpush.bf16.msra.mxu0 %v822
      %837 = vmatmul.bf16.gmra.mxu0 %v827
      %v838 = vpop.f32.mrf.mxu0
      %v839 = vadd.f32 %v813, %v838
      %v840 = vpop.f32.mrf.mxu0
      %841 = vdwg.mxu0
      %v842 = vmul.f32 %v839, 1.702
      %v843 = vxor.u32 %v842, 2147483648
      %v844 = vmul.f32 %v843, 1.442695
      %v845 = vpow.pop %v844
      %v846 = vadd.f32 %v845, 1.0
      %v847 = vrcp.pop %v846
      %v848 = vmul.f32 %v846, %v847
      %v849 = vsub.f32 1.0, %v848
      %v850 = vmul.f32 %v847, %v849
      %v851 = vadd.f32 %v847, %v850
      %vm852 = vweird.f32 %v846
      %vm853 = vweird.f32 %v847
      %vm854 = vmor %vm852, %vm853
      %v855 = vsel %vm854, %v847, %v851
      %v856 = vand.u32 2147483647, %v846
      %vm857 = vcmp.eq.f32.partialorder %v856, 8.507059e+37
      %v858 = vand.u32 %v846, 2147483648
      %v859 = vor.u32 1.1754944e-38, %v858
      %v860 = vsel %vm857, %v859, %v855
      %v861 = vmul.f32 1.0, %v860
      %v862 = vmul.f32 %v839, %v861
      %v863 = vpack.c.bf16 %v862, %v862
      %v864 = vld [vmem:[%s414] sm:$0xf]
      %v865 = vld [vmem:[%s414 + $0x4] sm:$0xf]
      %v866 = vld [vmem:[%s414 + $0x8] sm:$0xf]
      %v867 = vld [vmem:[%s414 + $0xc] sm:$0xf]
      %v868 = vld [vmem:[%s414 + $0x10] sm:$0xf]
      %v869 = vld [vmem:[%s414 + $0x14] sm:$0xf]
      %v870 = vld [vmem:[%s414 + $0x18] sm:$0xf]
      %v871 = vld [vmem:[%s414 + $0x1c] sm:$0xf]
      %v872 = vld [vmem:[%s414 + $0x20] sm:$0xf]
      %v873 = vld [vmem:[%s414 + $0x24] sm:$0xf]
      %v874 = vld [vmem:[%s414 + $0x28] sm:$0xf]
      %v875 = vld [vmem:[%s414 + $0x2c] sm:$0xf]
      %v876 = vld [vmem:[%s414 + $0x30] sm:$0xf]
      %v877 = vld [vmem:[%s414 + $0x34] sm:$0xf]
      %v878 = vld [vmem:[%s414 + $0x38] sm:$0xf]
      %v879 = vld [vmem:[%s414 + $0x3c] sm:$0xf]
      %v896 = vunpack.c.l.b16 %v864
      %v897 = vunpack.c.l.b16 %v865
      %v898 = vunpack.c.l.b16 %v866
      %v899 = vunpack.c.l.b16 %v867
      %v900 = vunpack.c.l.b16 %v868
      %v901 = vunpack.c.l.b16 %v869
      %v902 = vunpack.c.l.b16 %v870
      %v903 = vunpack.c.l.b16 %v871
      %v904 = vunpack.c.l.b16 %v872
      %v905 = vunpack.c.l.b16 %v873
      %v906 = vunpack.c.l.b16 %v874
      %v907 = vunpack.c.l.b16 %v875
      %v908 = vunpack.c.l.b16 %v876
      %v909 = vunpack.c.l.b16 %v877
      %v910 = vunpack.c.l.b16 %v878
      %v911 = vunpack.c.l.b16 %v879
      %v912 = vpack.c.b16 %v897, %v896
      %v913 = vpack.c.b16 %v899, %v898
      %v914 = vpack.c.b16 %v901, %v900
      %v915 = vpack.c.b16 %v903, %v902
      %v916 = vpack.c.b16 %v905, %v904
      %v917 = vpack.c.b16 %v907, %v906
      %v918 = vpack.c.b16 %v909, %v908
      %v919 = vpack.c.b16 %v911, %v910
      %928 = vmatpush.bf16.msra.mxu0 %v919
      %929 = vmatpush.bf16.msra.mxu0 %v918
      %930 = vmatpush.bf16.msra.mxu0 %v917
      %931 = vmatpush.bf16.msra.mxu0 %v916
      %932 = vmatpush.bf16.msra.mxu0 %v915
      %933 = vmatpush.bf16.msra.mxu0 %v914
      %934 = vmatpush.bf16.msra.mxu0 %v913
      %935 = vmatpush.bf16.msra.mxu0 %v912
      %936 = vmatmul.bf16.gmra.mxu0 %v863
      %v937 = vpop.f32.mrf.mxu0
      %v938 = vadd.f32 0.0, %v937
      %v939 = vpop.f32.mrf.mxu0
      %940 = vdwg.mxu0
      %v941 = vadd.f32 %v781, %v938
      %v942 = vperm.slane %v428, 7
      %v943 = vadd.f32 %v941, %v942
      %944 = vst.msk [vmem:[#allocation2] sm:$0xff] %vm429, %v943
      %p945 = scmp.eq.s32.totalorder %s33, 1
      // Predicated region
      $region57: #{encode_text.1} parent=51 // pred_check
        %p946 = pneg %p945
      $region58: #{encode_text.1} parent=51 // pred_check_branch
        %948 = sbr.rel (%p946) target = $region60
      $region59: #{encode_text.1} parent=51 // pred_region
        %s949 = sld [smem:[#allocation4 + %s32]]
        %s950 = scalar_lea.vmem [#allocation2], %s949
        %v951 = vld [vmem:[%s950] sm:$0x1]
        %v952 = vld [vmem:[%s7] sm:$0x3]
        %vm953 = vcmask 253952
        %v954 = vsel %vm953, %v951, 0.0
        %955 = vadd.xlane.f32.xlu0 %v954
        %v956 = vpop.xlane.xlu0 %955
        %v957 = vmul.f32 %v956, %v439
        %v958 = vsub.f32 %v951, %v957
        %v959 = vmul.f32 %v958, %v958
        %v960 = vsel %vm953, %v959, 0.0
        %961 = vadd.xlane.f32.xlu0 %v960
        %v962 = vpop.xlane.xlu0 %961
        %v963 = vmul.f32 %v962, %v439
        %v964 = vadd.f32 %v963, 1e-05
        %v965 = vrsqrt.pop %v964
        %v966 = vmul.f32 %v965, %v964
        %v967 = vmul.f32 %v966, %v965
        %v968 = vmul.f32 0.5, %v967
        %v969 = vsub.f32 1.5, %v968
        %v970 = vmul.f32 %v965, %v969
        %vm971 = vweird.f32 %v964
        %vm972 = vweird.f32 %v965
        %vm973 = vmor %vm971, %vm972
        %v974 = vsel %vm973, %v965, %v970
        %v975 = vmul.f32 %v958, %v974
        %v976 = vmul.f32 %v975, %v952
        %v978 = vrot.slane %v952, 1
        %v980 = vadd.f32 %v976, %v978
        %v981 = vpack.c.bf16 %v980, %v980
        %v982 = vld [vmem:[%s8] sm:$0xf]
        %v983 = vld [vmem:[%s8 + $0x4] sm:$0xf]
        %v984 = vld [vmem:[%s8 + $0x8] sm:$0xf]
        %v985 = vld [vmem:[%s8 + $0xc] sm:$0xf]
        %v990 = vunpack.c.l.b16 %v982
        %v991 = vunpack.c.l.b16 %v983
        %v992 = vunpack.c.l.b16 %v984
        %v993 = vunpack.c.l.b16 %v985
        %v994 = vpack.c.b16 %v991, %v990
        %v995 = vpack.c.b16 %v993, %v992
        %v999 = vsel %vm429, %v981, 0
        %1001 = vmatpush.bf16.msra.mxu0 0
        %1002 = vmatpush.bf16.msra.mxu0 0
        %1003 = vmatpush.bf16.msra.mxu0 0
        %1004 = vmatpush.bf16.msra.mxu0 0
        %1005 = vmatpush.bf16.msra.mxu0 0
        %1006 = vmatpush.bf16.msra.mxu0 0
        %1007 = vmatpush.bf16.msra.mxu0 %v995
        %1008 = vmatpush.bf16.msra.mxu0 %v994
        %1009 = vmatmul.bf16.gmra.mxu0 %v999
        %v1010 = vpop.f32.mrf.mxu0
        %v1011 = vadd.f32 0.0, %v1010
        %v1012 = vpop.f32.mrf.mxu0
        %1013 = vdwg.mxu0
        %v1014 = vperm.slane %v1011, 0
        %1015 = vst [vmem:[%s418] sm:$0xff] %v1014
      $region60: #{encode_text.1} parent=51 // pred_fallthru
        _
      %p1016 = scmp.lt.s32.totalorder %s32, 1
      %s1017 = scalar_select %p1016, %s32, 1
      %s1018 = smul.addr %s1017, 8
      %s1019 = scalar_lea.vmem %s9, %s1018
      // Predicated region
      $region61: #{encode_text.1} parent=51 // pred_check
        %p1020 = pneg %p256
      $region62: #{encode_text.1} parent=51 // pred_check_branch
        %1022 = sbr.rel (%p1020) target = $region64
      $region63: #{encode_text.1} parent=51 // pred_region
        _
      $region64: #{encode_text.1} parent=51 // pred_fallthru
        _
    $region52: #{encode_text.1} parent=5 // pred_fallthru
      _
    %p1023 = scmp.le.s32.totalorder 2, %s23
    // Predicated region
    $region65: #{encode_text.1} parent=5 // pred_check
      %p1024 = pneg %p1023
    $region66: #{encode_text.1} parent=5 // pred_check_branch
      %1026 = sbr.rel (%p1024) target = $region68
    $region67: #{encode_text.1} parent=5 // pred_region
      %s1027 = ssub.s32 %s23, 2
      // Predicated region
      $region69: #{encode_text.1} parent=67 // pred_check
        %p1028 = pneg %p262
      $region70: #{encode_text.1} parent=67 // pred_check_branch
        %1030 = sbr.rel (%p1028) target = $region72
      $region71: #{encode_text.1} parent=67 // pred_region
        %p1031 = scmp.lt.s32.totalorder %s34, 1
        %s1032 = scalar_select %p1031, %s34, 1
        %s1033 = smul.addr %s1032, 8
        %s1034 = scalar_lea.vmem %s9, %s1033
      $region72: #{encode_text.1} parent=67 // pred_fallthru
        _
    $region68: #{encode_text.1} parent=5 // pred_fallthru
      _
  $region6: #{encode_text.1} parent=0 // loop_footer
    %s27 = sadd.s32 1, %s23
  $region7: #{encode_text.1} parent=0 // loop_footer_branch
    %22 = sbr.rel target = $region3
  $region8: #{encode_text.1} parent=0 // loop_exit
    _

</llo_original>
